<compile_context>
chip_gen: v6e
topology: v6e:2x2x1
jax: 0.10.0
libtpu: 0.0.40
codegen_flags: <defaults>
</compile_context>

<pallas_src>
import functools

import jax
import jax.numpy as jnp
from jax.experimental import pallas as pl
from jax.experimental.pallas import tpu as pltpu


def _conv_bn_relu_kernel(x_ref, w_ref, shift_ref, o_ref, col_ref,
                         *, kh, kw, stride, ho, wo):
    # x_ref    : (1, Hp, Wp, C)     padded NHWC slab for one image (bf16)
    # w_ref    : (kh*kw*C, O_pad)   BN-scale-folded weights (bf16)
    # shift_ref: (1, O_pad)         BN shift (f32)
    # o_ref    : (1, ho*wo, O_pad)  output tile (bf16)
    # col_ref  : (ho*wo, kh*kw*C)   VMEM im2col scratch (bf16)
    xv = x_ref[0]                                    # (Hp, Wp, C)
    c = xv.shape[-1]
    m = ho * wo

    # Build the im2col patch matrix in VMEM: one cheap slice + major-dim
    # reshape + narrow store per tap (static offsets, no HBM traffic).
    for dy in range(kh):
        for dx in range(kw):
            if stride == 1:
                sl = xv[dy:dy + ho, dx:dx + wo, :]                  # (ho, wo, c)
            else:
                sl = jax.lax.slice(
                    xv, (dy, dx, 0),
                    (dy + (ho - 1) * stride + 1, dx + (wo - 1) * stride + 1, c),
                    (stride, stride, 1))
            tap = dy * kw + dx
            col_ref[:, tap * c:(tap + 1) * c] = sl.reshape(m, c)

    # Single K = kh*kw*C matmul on the MXU, f32 accumulation.
    acc = jnp.dot(col_ref[...], w_ref[...], preferred_element_type=jnp.float32)

    # Epilogue: BN shift + ReLU, lane-dense (128-lane) bf16 store.
    o_ref[0] = jnp.maximum(acc + shift_ref[...], 0.0).astype(o_ref.dtype)


def basic_conv_pallas(x_nchw, weight_oihw, gamma, beta, running_mean, running_var,
                      *, stride=1, padding=1, dilation=1, groups=1,
                      eps=1e-5, lane_pad=128):
    """BasicConv forward: conv(no bias) -> BN(eval) -> ReLU.  x is NCHW."""
    N, C, H, W = x_nchw.shape
    O, I, KH, KW = weight_oihw.shape
    assert groups == 1 and I == C, "groups != 1 not supported"
    assert dilation == 1, "dilation != 1 not supported"

    Ho = (H + 2 * padding - KH) // stride + 1
    Wo = (W + 2 * padding - KW) // stride + 1
    Hp, Wp = H + 2 * padding, W + 2 * padding
    O_pad = ((O + lane_pad - 1) // lane_pad) * lane_pad
    K = KH * KW * C

    # --- glue: NCHW -> NHWC, spatial zero-pad, bf16.  The input slab is read
    # from HBM exactly once; no im2col is ever materialized in HBM. ---
    x_nhwc = jnp.transpose(x_nchw, (0, 2, 3, 1))
    x_pad = jnp.pad(x_nhwc, ((0, 0), (padding, padding), (padding, padding), (0, 0)))
    x_pad = x_pad.astype(jnp.bfloat16)

    # Fold BN (eval) scale into the conv weights; lay them out as the (K, O_pad)
    # RHS of the single fused matmul, row index = (dy*KW + dx)*C + c to match
    # the in-kernel im2col column order.
    scale = gamma / jnp.sqrt(running_var + eps)                    # (O,)
    shift = beta - running_mean * scale                            # (O,)
    w_t = jnp.transpose(weight_oihw, (2, 3, 1, 0)).reshape(K, O)   # (K, O)
    w_t = w_t * scale[None, :]
    w_t = jnp.pad(w_t, ((0, 0), (0, O_pad - O))).astype(jnp.bfloat16)
    shift_p = jnp.pad(shift, (0, O_pad - O)).astype(jnp.float32).reshape(1, O_pad)

    kernel = functools.partial(_conv_bn_relu_kernel,
                               kh=KH, kw=KW, stride=stride, ho=Ho, wo=Wo)

    out = pl.pallas_call(
        kernel,
        out_shape=jax.ShapeDtypeStruct((N, Ho * Wo, O_pad), jnp.bfloat16),
        grid_spec=pltpu.PrefetchScalarGridSpec(
            num_scalar_prefetch=0,
            grid=(N,),
            in_specs=[
                pl.BlockSpec((1, Hp, Wp, C), lambda n: (n, 0, 0, 0)),
                pl.BlockSpec((K, O_pad), lambda n: (0, 0)),
                pl.BlockSpec((1, O_pad), lambda n: (0, 0)),
            ],
            out_specs=pl.BlockSpec((1, Ho * Wo, O_pad), lambda n: (n, 0, 0)),
            scratch_shapes=[pltpu.VMEM((Ho * Wo, K), jnp.bfloat16)],
        ),
        compiler_params=pltpu.CompilerParams(
            dimension_semantics=("parallel",)),
    )(x_pad, w_t, shift_p)

    # Drop lane padding, back to NCHW, restore f32 interface dtype.
    out = out[:, :, :O].reshape(N, Ho, Wo, O)
    return jnp.transpose(out, (0, 3, 1, 2)).astype(jnp.float32)


def _reference(x, w, gamma, beta, mean, var, *, stride, padding, eps):
    y = jax.lax.conv_general_dilated(
        x.astype(jnp.float32), w.astype(jnp.float32),
        window_strides=(stride, stride),
        padding=[(padding, padding), (padding, padding)],
        dimension_numbers=("NCHW", "OIHW", "NCHW"))
    s = gamma / jnp.sqrt(var + eps)
    y = y * s[None, :, None, None] + (beta - mean * s)[None, :, None, None]
    return jnp.maximum(y, 0.0)


if __name__ == "__main__":
    key = jax.random.PRNGKey(0)
    k1, k2, k3, k4, k5, k6 = jax.random.split(key, 6)

    # BasicConv(in_planes=4, out_planes=8, kernel_size=3, stride=1, padding=1)
    N, Cin, H, W = 2, 4, 16, 16
    Cout, KH, KW = 8, 3, 3
    stride, padding, eps = 1, 1, 1e-5

    x = jax.random.normal(k1, (N, Cin, H, W), jnp.float32)
    weight = jax.random.normal(k2, (Cout, Cin, KH, KW), jnp.float32) * 0.1
    gamma = jax.random.normal(k3, (Cout,), jnp.float32) * 0.1 + 1.0
    beta = jax.random.normal(k4, (Cout,), jnp.float32) * 0.1
    running_mean = jax.random.normal(k5, (Cout,), jnp.float32) * 0.1
    running_var = jnp.abs(jax.random.normal(k6, (Cout,), jnp.float32)) * 0.1 + 1.0

    out = basic_conv_pallas(x, weight, gamma, beta, running_mean, running_var,
                            stride=stride, padding=padding, eps=eps)
    out = jax.block_until_ready(out)

    ref = _reference(x, weight, gamma, beta, running_mean, running_var,
                     stride=stride, padding=padding, eps=eps)
    assert out.shape == (N, Cout, H, W)
    # bf16 activations/weights/output (f32 accumulation) -> loose comparison.
    err = jnp.max(jnp.abs(out - ref))
    assert err < 5e-2, f"max abs err {err}"

    print("KERNEL_OK")
</pallas_src>

<mosaic_0001>
module attributes {stable_mosaic.version = 11 : i64} {
  func.func @_conv_bn_relu_kernel(%arg0: i32, %arg1: memref<1x18x18x4xbf16, #tpu.memory_space<vmem>>, %arg2: memref<36x128xbf16, #tpu.memory_space<vmem>>, %arg3: memref<1x128xf32, #tpu.memory_space<vmem>>, %arg4: memref<1x256x128xbf16, #tpu.memory_space<vmem>>, %arg5: memref<256x36xbf16, #tpu.memory_space<vmem>>) attributes {dimension_semantics = [#tpu.dimension_semantics<parallel>], iteration_bounds = array<i64: 2>, scalar_prefetch = 0 : i64, scratch_operands = 1 : i64, tpu.core_type = #tpu.core_type<tc>, window_params = [{transform_indices = @transform_0, window_bounds = array<i64: 1, 18, 18, 4>}, {pipeline_mode = #tpu.pipeline_mode<synchronous>, transform_indices = @transform_1, window_bounds = array<i64: 36, 128>}, {pipeline_mode = #tpu.pipeline_mode<synchronous>, transform_indices = @transform_2, window_bounds = array<i64: 1, 128>}, {transform_indices = @transform_3, window_bounds = array<i64: 1, 256, 128>}]} {
    %c0 = arith.constant 0 : index
    %c0_0 = arith.constant 0 : index
    %c0_1 = arith.constant 0 : index
    %c0_2 = arith.constant 0 : index
    %0 = vector.load %arg1[%c0, %c0_0, %c0_1, %c0_2] : memref<1x18x18x4xbf16, #tpu.memory_space<vmem>>, vector<1x18x18x4xbf16>
    %1 = vector.shape_cast %0 : vector<1x18x18x4xbf16> to vector<18x18x4xbf16>
    %2 = vector.extract_strided_slice %1 {offsets = [0, 0, 0], sizes = [16, 16, 4], strides = [1, 1, 1]} : vector<18x18x4xbf16> to vector<16x16x4xbf16>
    %3 = vector.shape_cast %2 : vector<16x16x4xbf16> to vector<256x4xbf16>
    %c0_3 = arith.constant 0 : index
    %c0_4 = arith.constant 0 : index
    %4 = vector.load %arg5[%c0_3, %c0_4] : memref<256x36xbf16, #tpu.memory_space<vmem>>, vector<256x4xbf16>
    tpu.vector_store %arg5[%c0_3, %c0_4], %3 {strides = array<i32>} : memref<256x36xbf16, #tpu.memory_space<vmem>>, vector<256x4xbf16>,
    %5 = vector.extract_strided_slice %1 {offsets = [0, 1, 0], sizes = [16, 16, 4], strides = [1, 1, 1]} : vector<18x18x4xbf16> to vector<16x16x4xbf16>
    %6 = vector.shape_cast %5 : vector<16x16x4xbf16> to vector<256x4xbf16>
    %c0_5 = arith.constant 0 : index
    %c4 = arith.constant 4 : index
    %7 = vector.load %arg5[%c0_5, %c4] : memref<256x36xbf16, #tpu.memory_space<vmem>>, vector<256x4xbf16>
    tpu.vector_store %arg5[%c0_5, %c4], %6 {strides = array<i32>} : memref<256x36xbf16, #tpu.memory_space<vmem>>, vector<256x4xbf16>,
    %8 = vector.extract_strided_slice %1 {offsets = [0, 2, 0], sizes = [16, 16, 4], strides = [1, 1, 1]} : vector<18x18x4xbf16> to vector<16x16x4xbf16>
    %9 = vector.shape_cast %8 : vector<16x16x4xbf16> to vector<256x4xbf16>
    %c0_6 = arith.constant 0 : index
    %c8 = arith.constant 8 : index
    %10 = vector.load %arg5[%c0_6, %c8] : memref<256x36xbf16, #tpu.memory_space<vmem>>, vector<256x4xbf16>
    tpu.vector_store %arg5[%c0_6, %c8], %9 {strides = array<i32>} : memref<256x36xbf16, #tpu.memory_space<vmem>>, vector<256x4xbf16>,
    %11 = vector.extract_strided_slice %1 {offsets = [1, 0, 0], sizes = [16, 16, 4], strides = [1, 1, 1]} : vector<18x18x4xbf16> to vector<16x16x4xbf16>
    %12 = vector.shape_cast %11 : vector<16x16x4xbf16> to vector<256x4xbf16>
    %c0_7 = arith.constant 0 : index
    %c12 = arith.constant 12 : index
    %13 = vector.load %arg5[%c0_7, %c12] : memref<256x36xbf16, #tpu.memory_space<vmem>>, vector<256x4xbf16>
    tpu.vector_store %arg5[%c0_7, %c12], %12 {strides = array<i32>} : memref<256x36xbf16, #tpu.memory_space<vmem>>, vector<256x4xbf16>,
    %14 = vector.extract_strided_slice %1 {offsets = [1, 1, 0], sizes = [16, 16, 4], strides = [1, 1, 1]} : vector<18x18x4xbf16> to vector<16x16x4xbf16>
    %15 = vector.shape_cast %14 : vector<16x16x4xbf16> to vector<256x4xbf16>
    %c0_8 = arith.constant 0 : index
    %c16 = arith.constant 16 : index
    %16 = vector.load %arg5[%c0_8, %c16] : memref<256x36xbf16, #tpu.memory_space<vmem>>, vector<256x4xbf16>
    tpu.vector_store %arg5[%c0_8, %c16], %15 {strides = array<i32>} : memref<256x36xbf16, #tpu.memory_space<vmem>>, vector<256x4xbf16>,
    %17 = vector.extract_strided_slice %1 {offsets = [1, 2, 0], sizes = [16, 16, 4], strides = [1, 1, 1]} : vector<18x18x4xbf16> to vector<16x16x4xbf16>
    %18 = vector.shape_cast %17 : vector<16x16x4xbf16> to vector<256x4xbf16>
    %c0_9 = arith.constant 0 : index
    %c20 = arith.constant 20 : index
    %19 = vector.load %arg5[%c0_9, %c20] : memref<256x36xbf16, #tpu.memory_space<vmem>>, vector<256x4xbf16>
    tpu.vector_store %arg5[%c0_9, %c20], %18 {strides = array<i32>} : memref<256x36xbf16, #tpu.memory_space<vmem>>, vector<256x4xbf16>,
    %20 = vector.extract_strided_slice %1 {offsets = [2, 0, 0], sizes = [16, 16, 4], strides = [1, 1, 1]} : vector<18x18x4xbf16> to vector<16x16x4xbf16>
    %21 = vector.shape_cast %20 : vector<16x16x4xbf16> to vector<256x4xbf16>
    %c0_10 = arith.constant 0 : index
    %c24 = arith.constant 24 : index
    %22 = vector.load %arg5[%c0_10, %c24] : memref<256x36xbf16, #tpu.memory_space<vmem>>, vector<256x4xbf16>
    tpu.vector_store %arg5[%c0_10, %c24], %21 {strides = array<i32>} : memref<256x36xbf16, #tpu.memory_space<vmem>>, vector<256x4xbf16>,
    %23 = vector.extract_strided_slice %1 {offsets = [2, 1, 0], sizes = [16, 16, 4], strides = [1, 1, 1]} : vector<18x18x4xbf16> to vector<16x16x4xbf16>
    %24 = vector.shape_cast %23 : vector<16x16x4xbf16> to vector<256x4xbf16>
    %c0_11 = arith.constant 0 : index
    %c28 = arith.constant 28 : index
    %25 = vector.load %arg5[%c0_11, %c28] : memref<256x36xbf16, #tpu.memory_space<vmem>>, vector<256x4xbf16>
    tpu.vector_store %arg5[%c0_11, %c28], %24 {strides = array<i32>} : memref<256x36xbf16, #tpu.memory_space<vmem>>, vector<256x4xbf16>,
    %26 = vector.extract_strided_slice %1 {offsets = [2, 2, 0], sizes = [16, 16, 4], strides = [1, 1, 1]} : vector<18x18x4xbf16> to vector<16x16x4xbf16>
    %27 = vector.shape_cast %26 : vector<16x16x4xbf16> to vector<256x4xbf16>
    %c0_12 = arith.constant 0 : index
    %c32 = arith.constant 32 : index
    %28 = vector.load %arg5[%c0_12, %c32] : memref<256x36xbf16, #tpu.memory_space<vmem>>, vector<256x4xbf16>
    tpu.vector_store %arg5[%c0_12, %c32], %27 {strides = array<i32>} : memref<256x36xbf16, #tpu.memory_space<vmem>>, vector<256x4xbf16>,
    %c0_13 = arith.constant 0 : index
    %c0_14 = arith.constant 0 : index
    %29 = vector.load %arg5[%c0_13, %c0_14] : memref<256x36xbf16, #tpu.memory_space<vmem>>, vector<256x36xbf16>
    %c0_15 = arith.constant 0 : index
    %c0_16 = arith.constant 0 : index
    %30 = vector.load %arg2[%c0_15, %c0_16] : memref<36x128xbf16, #tpu.memory_space<vmem>>, vector<36x128xbf16>
    %cst = arith.constant dense<0.000000e+00> : vector<256x128xf32>
    %31 = tpu.matmul %29, %30, %cst {dimension_numbers = #tpu.dot_dimension_numbers<[1], [0], [0], [1], [0, 0, 1, 1], [], []>} : vector<256x36xbf16>, vector<36x128xbf16>, vector<256x128xf32> -> vector<256x128xf32>
    %c0_17 = arith.constant 0 : index
    %c0_18 = arith.constant 0 : index
    %32 = vector.load %arg3[%c0_17, %c0_18] : memref<1x128xf32, #tpu.memory_space<vmem>>, vector<1x128xf32>
    %33 = vector.broadcast %32 : vector<1x128xf32> to vector<256x128xf32>
    %34 = arith.addf %31, %33 : vector<256x128xf32>
    %cst_19 = arith.constant 0.000000e+00 : f32
    %35 = vector.broadcast %cst_19 : f32 to vector<256x128xf32>
    %36 = arith.maximumf %34, %35 : vector<256x128xf32>
    %37 = arith.truncf %36 : vector<256x128xf32> to vector<256x128xbf16>
    %c0_20 = arith.constant 0 : index
    %c0_21 = arith.constant 0 : index
    %c0_22 = arith.constant 0 : index
    %38 = vector.load %arg4[%c0_20, %c0_21, %c0_22] : memref<1x256x128xbf16, #tpu.memory_space<vmem>>, vector<1x256x128xbf16>
    %39 = vector.shape_cast %38 : vector<1x256x128xbf16> to vector<256x128xbf16>
    %40 = vector.shape_cast %37 : vector<256x128xbf16> to vector<1x256x128xbf16>
    tpu.vector_store %arg4[%c0_20, %c0_21, %c0_22], %40 {strides = array<i32>} : memref<1x256x128xbf16, #tpu.memory_space<vmem>>, vector<1x256x128xbf16>,
    return
  }
  func.func @transform_0(%arg0: i32) -> (i32, i32, i32, i32) {
    %c0_i32 = arith.constant 0 : i32
    %c0_i32_0 = arith.constant 0 : i32
    %c0_i32_1 = arith.constant 0 : i32
    %c0_i32_2 = arith.constant 0 : i32
    return %arg0, %c0_i32, %c0_i32_0, %c0_i32_1 : i32, i32, i32, i32
  }
  func.func @transform_1(%arg0: i32) -> (i32, i32) {
    %c0_i32 = arith.constant 0 : i32
    %c0_i32_0 = arith.constant 0 : i32
    %c0_i32_1 = arith.constant 0 : i32
    return %c0_i32, %c0_i32_0 : i32, i32
  }
  func.func @transform_2(%arg0: i32) -> (i32, i32) {
    %c0_i32 = arith.constant 0 : i32
    %c0_i32_0 = arith.constant 0 : i32
    %c0_i32_1 = arith.constant 0 : i32
    return %c0_i32, %c0_i32_0 : i32, i32
  }
  func.func @transform_3(%arg0: i32) -> (i32, i32, i32) {
    %c0_i32 = arith.constant 0 : i32
    %c0_i32_0 = arith.constant 0 : i32
    %c0_i32_1 = arith.constant 0 : i32
    return %arg0, %c0_i32, %c0_i32_0 : i32, i32, i32
  }
}

</mosaic_0001>

<llo_original>
// kernel: tpu_custom_call.1
$region0: #{tpu_custom_call.1}
  #allocation0 [shape = 'u32[]', space=smem, size = 0x4, offset = 0x4, fixed_abs, tag = 'smem constant byte address 0x4 - core index']
  #allocation1 [shape = 'u32[144,128]{1,0:T(1,128)}', space=vmem, size = 0x12000, scoped, tag = 'internal scratch']
  #allocation2 [shape = 'bf16[256,36]{1,0:T(8,128)(2,1)}', space=vmem, size = 0x10000, scoped, tag = 'scratch operand']
  %s0 = inlined_call_operand.vmem [shape: bf16[2,18,18,4], index: 0, kind: input, shape index: {}]
  %s1 = inlined_call_operand.vmem [shape: bf16[36,128], index: 1, kind: input, shape index: {}]
  %s2 = inlined_call_operand.vmem [shape: f32[1,128], index: 2, kind: input, shape index: {}]
  %s3 = inlined_call_operand.hbm [shape: bf16[2,256,128], index: 3, kind: output, shape index: {}]
  %s4 = sld [smem:[#allocation0]]
  $region45: #{tpu_custom_call.1} parent=0
    _
  %s6 = ssub.s32 1, %s4
  %s7 = scalar_select 0, %s6, %s4
  $region1: #{tpu_custom_call.1} parent=0
    #allocation3 [shape = 'u8[131072]{0}', space=vmem, size = 0x20000, scoped, tag = 'output window, operand 0']
    #allocation4 [shape = 's32[2]{0}', space=sflag, size = 0x8, scoped, tag = 'scoped memory for tpu_custom_call.1']
    %8 = vsyncpa [#allocation4], 0
    %s9 = scalar_lea.sflag [#allocation4], 1
    %10 = vsyncpa %s9, 0
    loop: start=0, step=1, limit=4
    $region2: #{tpu_custom_call.1} parent=1 // loop_pre_header
      _
    $region3: #{tpu_custom_call.1} parent=1 // loop_header
      %s12 = sphi 0, %s16
      %p13 = scmp.ge.s32.totalorder %s12, 4
      %s22 = sphi 0, %s24
      %s25 = sphi 0, %s22
      %s26 = sphi 0, %s25
      %s42 = sphi 0, %s26
      %s46 = sphi 0, %s46
      %s48 = sphi 0, %s46
      %s49 = sphi 0, %s48
      %s63 = sphi 0, %s49
      %s67 = sphi 0, %s67
      %s69 = sphi 0, %s67
      %s70 = sphi 0, %s69
      %s84 = sphi 0, %s70
      %s90 = sphi 0, %s92
      %s93 = sphi 0, %s90
      %s94 = sphi 0, %s93
      %s110 = sphi 0, %s94
    $region4: #{tpu_custom_call.1} parent=1 // loop_header_branch
      %15 = sbr.rel (%p13) target = $region8
    $region5: #{tpu_custom_call.1} parent=1 // loop_body
      %s17 = ssub.s32 %s12, 1
      %s18 = ssub.s32 %s12, 2
      %s19 = sadd.s32 %s12, 1
      %s20 = ssub.s32 %s12, %s19
      %p21 = scmp.eq.s32.totalorder %s20, 0
      %s23 = sadd.s32 %s22, 1
      %s24 = scalar_select %p21, %s22, %s23
      %p27 = pneg %p21
      %p28 = scmp.eq.s32.totalorder %s12, 1
      %p29 = por %p27, %p28
      %p30 = scmp.ne.s32.totalorder %s22, %s25
      %p31 = scmp.eq.s32.totalorder %s12, 0
      %p32 = por %p30, %p31
      %p33 = scmp.ne.s32.totalorder %s22, %s25
      %p34 = scmp.eq.s32.totalorder %s17, 1
      %p35 = por %p33, %p34
      %p36 = scmp.ne.s32.totalorder %s25, %s26
      %p37 = scmp.eq.s32.totalorder %s17, 0
      %p38 = por %p36, %p37
      %p39 = scmp.ne.s32.totalorder %s25, %s26
      %p40 = scmp.eq.s32.totalorder %s18, 1
      %p41 = por %p39, %p40
      %p43 = scmp.ne.s32.totalorder %s26, %s42
      %p44 = scmp.eq.s32.totalorder %s18, 0
      %p45 = por %p43, %p44
      %s47 = sadd.s32 %s46, 1
      %p50 = scmp.eq.s32.totalorder %s12, 1
      %p51 = scmp.ne.s32.totalorder %s46, %s48
      %p52 = scmp.eq.s32.totalorder %s12, 0
      %p53 = por %p51, %p52
      %p54 = scmp.ne.s32.totalorder %s46, %s48
      %p55 = scmp.eq.s32.totalorder %s17, 1
      %p56 = por %p54, %p55
      %p57 = scmp.ne.s32.totalorder %s48, %s49
      %p58 = scmp.eq.s32.totalorder %s17, 0
      %p59 = por %p57, %p58
      %p60 = scmp.ne.s32.totalorder %s48, %s49
      %p61 = scmp.eq.s32.totalorder %s18, 1
      %p62 = por %p60, %p61
      %p64 = scmp.ne.s32.totalorder %s49, %s63
      %p65 = scmp.eq.s32.totalorder %s18, 0
      %p66 = por %p64, %p65
      %s68 = sadd.s32 %s67, 1
      %p71 = scmp.eq.s32.totalorder %s12, 1
      %p72 = scmp.ne.s32.totalorder %s67, %s69
      %p73 = scmp.eq.s32.totalorder %s12, 0
      %p74 = por %p72, %p73
      %p75 = scmp.ne.s32.totalorder %s67, %s69
      %p76 = scmp.eq.s32.totalorder %s17, 1
      %p77 = por %p75, %p76
      %p78 = scmp.ne.s32.totalorder %s69, %s70
      %p79 = scmp.eq.s32.totalorder %s17, 0
      %p80 = por %p78, %p79
      %p81 = scmp.ne.s32.totalorder %s69, %s70
      %p82 = scmp.eq.s32.totalorder %s18, 1
      %p83 = por %p81, %p82
      %p85 = scmp.ne.s32.totalorder %s70, %s84
      %p86 = scmp.eq.s32.totalorder %s18, 0
      %p87 = por %p85, %p86
      %s88 = ssub.s32 %s12, %s19
      %p89 = scmp.eq.s32.totalorder %s88, 0
      %s91 = sadd.s32 %s90, 1
      %s92 = scalar_select %p89, %s90, %s91
      %p95 = pneg %p89
      %p96 = scmp.eq.s32.totalorder %s12, 1
      %p97 = por %p95, %p96
      %p98 = scmp.ne.s32.totalorder %s90, %s93
      %p99 = scmp.eq.s32.totalorder %s12, 0
      %p100 = por %p98, %p99
      %p101 = scmp.ne.s32.totalorder %s90, %s93
      %p102 = scmp.eq.s32.totalorder %s17, 1
      %p103 = por %p101, %p102
      %p104 = scmp.ne.s32.totalorder %s93, %s94
      %p105 = scmp.eq.s32.totalorder %s17, 0
      %p106 = por %p104, %p105
      %p107 = scmp.ne.s32.totalorder %s93, %s94
      %p108 = scmp.eq.s32.totalorder %s18, 1
      %p109 = por %p107, %p108
      %p111 = scmp.ne.s32.totalorder %s94, %s110
      %p112 = scmp.eq.s32.totalorder %s18, 0
      %p113 = por %p111, %p112
      %p114 = scmp.le.s32.totalorder 1, %s12
      %p115 = scmp.lt.s32.totalorder %s12, 3
      %p116 = pnand %p114, %p115
      %p117 = pneg %p116
      // Predicated region
      $region9: #{tpu_custom_call.1} parent=5 // pred_check
        _
      $region10: #{tpu_custom_call.1} parent=5 // pred_check_branch
        %119 = sbr.rel (%p116) target = $region12
      $region11: #{tpu_custom_call.1} parent=5 // pred_region
        %s120 = ssub.s32 %s12, 1
        // Predicated region
        $region13: #{tpu_custom_call.1} parent=11 // pred_check
          %p121 = pneg %p59
        $region14: #{tpu_custom_call.1} parent=11 // pred_check_branch
          %123 = sbr.rel (%p121) target = $region16
        $region15: #{tpu_custom_call.1} parent=11 // pred_region
          _
        $region16: #{tpu_custom_call.1} parent=11 // pred_fallthru
          _
        // Predicated region
        $region17: #{tpu_custom_call.1} parent=11 // pred_check
          %p124 = pneg %p80
        $region18: #{tpu_custom_call.1} parent=11 // pred_check_branch
          %126 = sbr.rel (%p124) target = $region20
        $region19: #{tpu_custom_call.1} parent=11 // pred_region
          _
        $region20: #{tpu_custom_call.1} parent=11 // pred_fallthru
          _
      $region12: #{tpu_custom_call.1} parent=5 // pred_fallthru
        _
      %p127 = scmp.lt.s32.totalorder %s12, 2
      // Predicated region
      $region21: #{tpu_custom_call.1} parent=5 // pred_check
        %p128 = pneg %p127
      $region22: #{tpu_custom_call.1} parent=5 // pred_check_branch
        %130 = sbr.rel (%p128) target = $region24
      $region23: #{tpu_custom_call.1} parent=5 // pred_region
        // Predicated region
        $region25: #{tpu_custom_call.1} parent=23 // pred_check
          %p131 = pneg %p32
        $region26: #{tpu_custom_call.1} parent=23 // pred_check_branch
          %133 = sbr.rel (%p131) target = $region28
        $region27: #{tpu_custom_call.1} parent=23 // pred_region
          %p134 = scmp.lt.s32.totalorder %s12, 1
          %s135 = scalar_select %p134, %s12, 1
          %s136 = smul.addr %s135, 54
          %s137 = smul.addr %s136, 4
          %s138 = scalar_lea.vmem %s0, %s137
        $region28: #{tpu_custom_call.1} parent=23 // pred_fallthru
          _
      $region24: #{tpu_custom_call.1} parent=5 // pred_fallthru
        _
      %p139 = scmp.le.s32.totalorder 1, %s12
      %p140 = scmp.lt.s32.totalorder %s12, 3
      %p141 = pnand %p139, %p140
      %p142 = pneg %p141
      // Predicated region
      $region29: #{tpu_custom_call.1} parent=5 // pred_check
        _
      $region30: #{tpu_custom_call.1} parent=5 // pred_check_branch
        %144 = sbr.rel (%p141) target = $region32
      $region31: #{tpu_custom_call.1} parent=5 // pred_region
        %s145 = ssub.s32 %s12, 1
        %p146 = scmp.lt.s32.totalorder %s17, 1
        %s147 = scalar_select %p146, %s17, 1
        %s148 = smul.addr %s147, 54
        %s149 = smul.addr %s148, 4
        %s150 = scalar_lea.vmem %s0, %s149
        %p151 = pneg %p38
        %p152 = pneg %p35
        %p153 = pneg %p59
        %p154 = pneg %p56
        %p155 = pneg %p80
        %p156 = pneg %p77
        %p157 = pneg %p106
        %p158 = pneg %p103
        %s159 = sand.u32 %s93, 1
        %s160 = scalar_lea.sflag [#allocation4], %s159
        %s161 = sand.u32 %s93, 1
        %s162 = smul.addr %s161, 128
        %s163 = scalar_lea.vmem [#allocation3], %s162
        %p164 = scmp.lt.s32.totalorder %s17, 1
        %s165 = scalar_select %p164, %s17, 1
        %s166 = smul.addr %s165, 54
        %s167 = smul.addr %s166, 4
        %s168 = scalar_lea.vmem %s0, %s167
        %v170 = vld [vmem:[%s168] sm:$0xf]
        %v171 = vld [vmem:[%s168 + $0x4] sm:$0xf]
        %v172 = vld [vmem:[%s168 + $0x8] sm:$0x1]
        %v173 = vld [vmem:[%s168 + $0xc] sm:$0xf]
        %v174 = vld [vmem:[%s168 + $0x10] sm:$0xf]
        %v175 = vld [vmem:[%s168 + $0x14] sm:$0x1]
        %v176 = vld [vmem:[%s168 + $0x18] sm:$0xf]
        %v177 = vld [vmem:[%s168 + $0x1c] sm:$0xf]
        %v178 = vld [vmem:[%s168 + $0x20] sm:$0x1]
        %v179 = vld [vmem:[%s168 + $0x24] sm:$0xf]
        %v180 = vld [vmem:[%s168 + $0x28] sm:$0xf]
        %v181 = vld [vmem:[%s168 + $0x2c] sm:$0x1]
        %v182 = vld [vmem:[%s168 + $0x30] sm:$0xf]
        %v183 = vld [vmem:[%s168 + $0x34] sm:$0xf]
        %v184 = vld [vmem:[%s168 + $0x38] sm:$0x1]
        %v185 = vld [vmem:[%s168 + $0x3c] sm:$0xf]
        %v186 = vld [vmem:[%s168 + $0x40] sm:$0xf]
        %v187 = vld [vmem:[%s168 + $0x44] sm:$0x1]
        %v188 = vld [vmem:[%s168 + $0x48] sm:$0xf]
        %v189 = vld [vmem:[%s168 + $0x4c] sm:$0xf]
        %v190 = vld [vmem:[%s168 + $0x50] sm:$0x1]
        %v191 = vld [vmem:[%s168 + $0x54] sm:$0xf]
        %v192 = vld [vmem:[%s168 + $0x58] sm:$0xf]
        %v193 = vld [vmem:[%s168 + $0x5c] sm:$0x1]
        %v194 = vld [vmem:[%s168 + $0x60] sm:$0xf]
        %v195 = vld [vmem:[%s168 + $0x64] sm:$0xf]
        %v196 = vld [vmem:[%s168 + $0x68] sm:$0x1]
        %v197 = vld [vmem:[%s168 + $0x6c] sm:$0xf]
        %v198 = vld [vmem:[%s168 + $0x70] sm:$0xf]
        %v199 = vld [vmem:[%s168 + $0x74] sm:$0x1]
        %v200 = vld [vmem:[%s168 + $0x78] sm:$0xf]
        %v201 = vld [vmem:[%s168 + $0x7c] sm:$0xf]
        %v202 = vld [vmem:[%s168 + $0x80] sm:$0x1]
        %v203 = vld [vmem:[%s168 + $0x84] sm:$0xf]
        %v204 = vld [vmem:[%s168 + $0x88] sm:$0xf]
        %v205 = vld [vmem:[%s168 + $0x8c] sm:$0x1]
        %v206 = vld [vmem:[%s168 + $0x90] sm:$0xf]
        %v207 = vld [vmem:[%s168 + $0x94] sm:$0xf]
        %v208 = vld [vmem:[%s168 + $0x98] sm:$0x1]
        %v209 = vld [vmem:[%s168 + $0x9c] sm:$0xf]
        %v210 = vld [vmem:[%s168 + $0xa0] sm:$0xf]
        %v211 = vld [vmem:[%s168 + $0xa4] sm:$0x1]
        %v212 = vld [vmem:[%s168 + $0xa8] sm:$0xf]
        %v213 = vld [vmem:[%s168 + $0xac] sm:$0xf]
        %v214 = vld [vmem:[%s168 + $0xb0] sm:$0x1]
        %v215 = vld [vmem:[%s168 + $0xb4] sm:$0xf]
        %v216 = vld [vmem:[%s168 + $0xb8] sm:$0xf]
        %v217 = vld [vmem:[%s168 + $0xbc] sm:$0x1]
        %v218 = vld [vmem:[%s168 + $0xc0] sm:$0xf]
        %v219 = vld [vmem:[%s168 + $0xc4] sm:$0xf]
        %v220 = vld [vmem:[%s168 + $0xc8] sm:$0x1]
        %v221 = vld [vmem:[%s168 + $0xcc] sm:$0xf]
        %v222 = vld [vmem:[%s168 + $0xd0] sm:$0xf]
        %v223 = vld [vmem:[%s168 + $0xd4] sm:$0x1]
        %vm224 = vcmask 27648
        %225 = vst.msk [vmem:[#allocation2] sm:$0xf] %vm224, %v170
        %226 = vst.msk [vmem:[#allocation2 + $0x4] sm:$0xf] %vm224, %v171
        %227 = vst.msk [vmem:[#allocation2 + $0x8] sm:$0xf] %vm224, %v173
        %228 = vst.msk [vmem:[#allocation2 + $0xc] sm:$0xf] %vm224, %v174
        %229 = vst.msk [vmem:[#allocation2 + $0x10] sm:$0xf] %vm224, %v176
        %230 = vst.msk [vmem:[#allocation2 + $0x14] sm:$0xf] %vm224, %v177
        %231 = vst.msk [vmem:[#allocation2 + $0x18] sm:$0xf] %vm224, %v179
        %232 = vst.msk [vmem:[#allocation2 + $0x1c] sm:$0xf] %vm224, %v180
        %233 = vst.msk [vmem:[#allocation2 + $0x20] sm:$0xf] %vm224, %v182
        %234 = vst.msk [vmem:[#allocation2 + $0x24] sm:$0xf] %vm224, %v183
        %235 = vst.msk [vmem:[#allocation2 + $0x28] sm:$0xf] %vm224, %v185
        %236 = vst.msk [vmem:[#allocation2 + $0x2c] sm:$0xf] %vm224, %v186
        %237 = vst.msk [vmem:[#allocation2 + $0x30] sm:$0xf] %vm224, %v188
        %238 = vst.msk [vmem:[#allocation2 + $0x34] sm:$0xf] %vm224, %v189
        %239 = vst.msk [vmem:[#allocation2 + $0x38] sm:$0xf] %vm224, %v191
        %240 = vst.msk [vmem:[#allocation2 + $0x3c] sm:$0xf] %vm224, %v192
        %241 = vst.msk [vmem:[#allocation2 + $0x40] sm:$0xf] %vm224, %v194
        %242 = vst.msk [vmem:[#allocation2 + $0x44] sm:$0xf] %vm224, %v195
        %243 = vst.msk [vmem:[#allocation2 + $0x48] sm:$0xf] %vm224, %v197
        %244 = vst.msk [vmem:[#allocation2 + $0x4c] sm:$0xf] %vm224, %v198
        %245 = vst.msk [vmem:[#allocation2 + $0x50] sm:$0xf] %vm224, %v200
        %246 = vst.msk [vmem:[#allocation2 + $0x54] sm:$0xf] %vm224, %v201
        %247 = vst.msk [vmem:[#allocation2 + $0x58] sm:$0xf] %vm224, %v203
        %248 = vst.msk [vmem:[#allocation2 + $0x5c] sm:$0xf] %vm224, %v204
        %249 = vst.msk [vmem:[#allocation2 + $0x60] sm:$0xf] %vm224, %v206
        %250 = vst.msk [vmem:[#allocation2 + $0x64] sm:$0xf] %vm224, %v207
        %251 = vst.msk [vmem:[#allocation2 + $0x68] sm:$0xf] %vm224, %v209
        %252 = vst.msk [vmem:[#allocation2 + $0x6c] sm:$0xf] %vm224, %v210
        %253 = vst.msk [vmem:[#allocation2 + $0x70] sm:$0xf] %vm224, %v212
        %254 = vst.msk [vmem:[#allocation2 + $0x74] sm:$0xf] %vm224, %v213
        %255 = vst.msk [vmem:[#allocation2 + $0x78] sm:$0xf] %vm224, %v215
        %256 = vst.msk [vmem:[#allocation2 + $0x7c] sm:$0xf] %vm224, %v216
        %vm257 = vsmask.f32 3328
        %vm258 = vsmask.f32 7440
        %vm259 = vmor %vm257, %vm258
        %v261 = vshrl.u32 %v170, 16
        %v263 = vrot.slane %v261, 4
        %v264 = vshll.u32 %v170, 16
        %v266 = vrot.slane %v264, 5
        %v267 = vor.u32 %v263, %v266
        %v268 = vrot.slane %v267, 4
        %v270 = vshll.u32 %v171, 16
        %v272 = vrot.slane %v270, 5
        %v273 = vsel %vm259, %v268, %v272
        %v274 = vshrl.u32 %v171, 16
        %v276 = vrot.slane %v274, 4
        %v277 = vor.u32 %v276, %v272
        %v278 = vrot.slane %v277, 4
        %v280 = vshll.u32 %v172, 16
        %v282 = vrot.slane %v280, 5
        %v283 = vsel %vm259, %v278, %v282
        %v285 = vshrl.u32 %v173, 16
        %v287 = vrot.slane %v285, 4
        %v288 = vshll.u32 %v173, 16
        %v290 = vrot.slane %v288, 5
        %v291 = vor.u32 %v287, %v290
        %v292 = vrot.slane %v291, 4
        %v294 = vshll.u32 %v174, 16
        %v296 = vrot.slane %v294, 5
        %v297 = vsel %vm259, %v292, %v296
        %v298 = vshrl.u32 %v174, 16
        %v300 = vrot.slane %v298, 4
        %v301 = vor.u32 %v300, %v296
        %v302 = vrot.slane %v301, 4
        %v304 = vshll.u32 %v175, 16
        %v306 = vrot.slane %v304, 5
        %v307 = vsel %vm259, %v302, %v306
        %v309 = vshrl.u32 %v176, 16
        %v311 = vrot.slane %v309, 4
        %v312 = vshll.u32 %v176, 16
        %v314 = vrot.slane %v312, 5
        %v315 = vor.u32 %v311, %v314
        %v316 = vrot.slane %v315, 4
        %v318 = vshll.u32 %v177, 16
        %v320 = vrot.slane %v318, 5
        %v321 = vsel %vm259, %v316, %v320
        %v322 = vshrl.u32 %v177, 16
        %v324 = vrot.slane %v322, 4
        %v325 = vor.u32 %v324, %v320
        %v326 = vrot.slane %v325, 4
        %v328 = vshll.u32 %v178, 16
        %v330 = vrot.slane %v328, 5
        %v331 = vsel %vm259, %v326, %v330
        %v333 = vshrl.u32 %v179, 16
        %v335 = vrot.slane %v333, 4
        %v336 = vshll.u32 %v179, 16
        %v338 = vrot.slane %v336, 5
        %v339 = vor.u32 %v335, %v338
        %v340 = vrot.slane %v339, 4
        %v342 = vshll.u32 %v180, 16
        %v344 = vrot.slane %v342, 5
        %v345 = vsel %vm259, %v340, %v344
        %v346 = vshrl.u32 %v180, 16
        %v348 = vrot.slane %v346, 4
        %v349 = vor.u32 %v348, %v344
        %v350 = vrot.slane %v349, 4
        %v352 = vshll.u32 %v181, 16
        %v354 = vrot.slane %v352, 5
        %v355 = vsel %vm259, %v350, %v354
        %v357 = vshrl.u32 %v182, 16
        %v359 = vrot.slane %v357, 4
        %v360 = vshll.u32 %v182, 16
        %v362 = vrot.slane %v360, 5
        %v363 = vor.u32 %v359, %v362
        %v364 = vrot.slane %v363, 4
        %v366 = vshll.u32 %v183, 16
        %v368 = vrot.slane %v366, 5
        %v369 = vsel %vm259, %v364, %v368
        %v370 = vshrl.u32 %v183, 16
        %v372 = vrot.slane %v370, 4
        %v373 = vor.u32 %v372, %v368
        %v374 = vrot.slane %v373, 4
        %v376 = vshll.u32 %v184, 16
        %v378 = vrot.slane %v376, 5
        %v379 = vsel %vm259, %v374, %v378
        %v381 = vshrl.u32 %v185, 16
        %v383 = vrot.slane %v381, 4
        %v384 = vshll.u32 %v185, 16
        %v386 = vrot.slane %v384, 5
        %v387 = vor.u32 %v383, %v386
        %v388 = vrot.slane %v387, 4
        %v390 = vshll.u32 %v186, 16
        %v392 = vrot.slane %v390, 5
        %v393 = vsel %vm259, %v388, %v392
        %v394 = vshrl.u32 %v186, 16
        %v396 = vrot.slane %v394, 4
        %v397 = vor.u32 %v396, %v392
        %v398 = vrot.slane %v397, 4
        %v400 = vshll.u32 %v187, 16
        %v402 = vrot.slane %v400, 5
        %v403 = vsel %vm259, %v398, %v402
        %v405 = vshrl.u32 %v188, 16
        %v407 = vrot.slane %v405, 4
        %v408 = vshll.u32 %v188, 16
        %v410 = vrot.slane %v408, 5
        %v411 = vor.u32 %v407, %v410
        %v412 = vrot.slane %v411, 4
        %v414 = vshll.u32 %v189, 16
        %v416 = vrot.slane %v414, 5
        %v417 = vsel %vm259, %v412, %v416
        %v418 = vshrl.u32 %v189, 16
        %v420 = vrot.slane %v418, 4
        %v421 = vor.u32 %v420, %v416
        %v422 = vrot.slane %v421, 4
        %v424 = vshll.u32 %v190, 16
        %v426 = vrot.slane %v424, 5
        %v427 = vsel %vm259, %v422, %v426
        %v429 = vshrl.u32 %v191, 16
        %v431 = vrot.slane %v429, 4
        %v432 = vshll.u32 %v191, 16
        %v434 = vrot.slane %v432, 5
        %v435 = vor.u32 %v431, %v434
        %v436 = vrot.slane %v435, 4
        %v438 = vshll.u32 %v192, 16
        %v440 = vrot.slane %v438, 5
        %v441 = vsel %vm259, %v436, %v440
        %v442 = vshrl.u32 %v192, 16
        %v444 = vrot.slane %v442, 4
        %v445 = vor.u32 %v444, %v440
        %v446 = vrot.slane %v445, 4
        %v448 = vshll.u32 %v193, 16
        %v450 = vrot.slane %v448, 5
        %v451 = vsel %vm259, %v446, %v450
        %v453 = vshrl.u32 %v194, 16
        %v455 = vrot.slane %v453, 4
        %v456 = vshll.u32 %v194, 16
        %v458 = vrot.slane %v456, 5
        %v459 = vor.u32 %v455, %v458
        %v460 = vrot.slane %v459, 4
        %v462 = vshll.u32 %v195, 16
        %v464 = vrot.slane %v462, 5
        %v465 = vsel %vm259, %v460, %v464
        %v466 = vshrl.u32 %v195, 16
        %v468 = vrot.slane %v466, 4
        %v469 = vor.u32 %v468, %v464
        %v470 = vrot.slane %v469, 4
        %v472 = vshll.u32 %v196, 16
        %v474 = vrot.slane %v472, 5
        %v475 = vsel %vm259, %v470, %v474
        %v477 = vshrl.u32 %v197, 16
        %v479 = vrot.slane %v477, 4
        %v480 = vshll.u32 %v197, 16
        %v482 = vrot.slane %v480, 5
        %v483 = vor.u32 %v479, %v482
        %v484 = vrot.slane %v483, 4
        %v486 = vshll.u32 %v198, 16
        %v488 = vrot.slane %v486, 5
        %v489 = vsel %vm259, %v484, %v488
        %v490 = vshrl.u32 %v198, 16
        %v492 = vrot.slane %v490, 4
        %v493 = vor.u32 %v492, %v488
        %v494 = vrot.slane %v493, 4
        %v496 = vshll.u32 %v199, 16
        %v498 = vrot.slane %v496, 5
        %v499 = vsel %vm259, %v494, %v498
        %v501 = vshrl.u32 %v200, 16
        %v503 = vrot.slane %v501, 4
        %v504 = vshll.u32 %v200, 16
        %v506 = vrot.slane %v504, 5
        %v507 = vor.u32 %v503, %v506
        %v508 = vrot.slane %v507, 4
        %v510 = vshll.u32 %v201, 16
        %v512 = vrot.slane %v510, 5
        %v513 = vsel %vm259, %v508, %v512
        %v514 = vshrl.u32 %v201, 16
        %v516 = vrot.slane %v514, 4
        %v517 = vor.u32 %v516, %v512
        %v518 = vrot.slane %v517, 4
        %v520 = vshll.u32 %v202, 16
        %v522 = vrot.slane %v520, 5
        %v523 = vsel %vm259, %v518, %v522
        %v525 = vshrl.u32 %v203, 16
        %v527 = vrot.slane %v525, 4
        %v528 = vshll.u32 %v203, 16
        %v530 = vrot.slane %v528, 5
        %v531 = vor.u32 %v527, %v530
        %v532 = vrot.slane %v531, 4
        %v534 = vshll.u32 %v204, 16
        %v536 = vrot.slane %v534, 5
        %v537 = vsel %vm259, %v532, %v536
        %v538 = vshrl.u32 %v204, 16
        %v540 = vrot.slane %v538, 4
        %v541 = vor.u32 %v540, %v536
        %v542 = vrot.slane %v541, 4
        %v544 = vshll.u32 %v205, 16
        %v546 = vrot.slane %v544, 5
        %v547 = vsel %vm259, %v542, %v546
        %v549 = vshrl.u32 %v206, 16
        %v551 = vrot.slane %v549, 4
        %v552 = vshll.u32 %v206, 16
        %v554 = vrot.slane %v552, 5
        %v555 = vor.u32 %v551, %v554
        %v556 = vrot.slane %v555, 4
        %v558 = vshll.u32 %v207, 16
        %v560 = vrot.slane %v558, 5
        %v561 = vsel %vm259, %v556, %v560
        %v562 = vshrl.u32 %v207, 16
        %v564 = vrot.slane %v562, 4
        %v565 = vor.u32 %v564, %v560
        %v566 = vrot.slane %v565, 4
        %v568 = vshll.u32 %v208, 16
        %v570 = vrot.slane %v568, 5
        %v571 = vsel %vm259, %v566, %v570
        %v573 = vshrl.u32 %v209, 16
        %v575 = vrot.slane %v573, 4
        %v576 = vshll.u32 %v209, 16
        %v578 = vrot.slane %v576, 5
        %v579 = vor.u32 %v575, %v578
        %v580 = vrot.slane %v579, 4
        %v582 = vshll.u32 %v210, 16
        %v584 = vrot.slane %v582, 5
        %v585 = vsel %vm259, %v580, %v584
        %v586 = vshrl.u32 %v210, 16
        %v588 = vrot.slane %v586, 4
        %v589 = vor.u32 %v588, %v584
        %v590 = vrot.slane %v589, 4
        %v592 = vshll.u32 %v211, 16
        %v594 = vrot.slane %v592, 5
        %v595 = vsel %vm259, %v590, %v594
        %v597 = vshrl.u32 %v212, 16
        %v599 = vrot.slane %v597, 4
        %v600 = vshll.u32 %v212, 16
        %v602 = vrot.slane %v600, 5
        %v603 = vor.u32 %v599, %v602
        %v604 = vrot.slane %v603, 4
        %v606 = vshll.u32 %v213, 16
        %v608 = vrot.slane %v606, 5
        %v609 = vsel %vm259, %v604, %v608
        %v610 = vshrl.u32 %v213, 16
        %v612 = vrot.slane %v610, 4
        %v613 = vor.u32 %v612, %v608
        %v614 = vrot.slane %v613, 4
        %v616 = vshll.u32 %v214, 16
        %v618 = vrot.slane %v616, 5
        %v619 = vsel %vm259, %v614, %v618
        %v621 = vshrl.u32 %v215, 16
        %v623 = vrot.slane %v621, 4
        %v624 = vshll.u32 %v215, 16
        %v626 = vrot.slane %v624, 5
        %v627 = vor.u32 %v623, %v626
        %v628 = vrot.slane %v627, 4
        %v630 = vshll.u32 %v216, 16
        %v632 = vrot.slane %v630, 5
        %v633 = vsel %vm259, %v628, %v632
        %v634 = vshrl.u32 %v216, 16
        %v636 = vrot.slane %v634, 4
        %v637 = vor.u32 %v636, %v632
        %v638 = vrot.slane %v637, 4
        %v640 = vshll.u32 %v217, 16
        %v642 = vrot.slane %v640, 5
        %v643 = vsel %vm259, %v638, %v642
        %644 = vrot.lane.b32.xlu0 %v273, 4
        %v645 = vpop.permute.xlu0 %644
        %646 = vrot.lane.b32.xlu0 %v283, 4
        %v647 = vpop.permute.xlu0 %646
        %648 = vrot.lane.b32.xlu0 %v297, 4
        %v649 = vpop.permute.xlu0 %648
        %650 = vrot.lane.b32.xlu0 %v307, 4
        %v651 = vpop.permute.xlu0 %650
        %652 = vrot.lane.b32.xlu0 %v321, 4
        %v653 = vpop.permute.xlu0 %652
        %654 = vrot.lane.b32.xlu0 %v331, 4
        %v655 = vpop.permute.xlu0 %654
        %656 = vrot.lane.b32.xlu0 %v345, 4
        %v657 = vpop.permute.xlu0 %656
        %658 = vrot.lane.b32.xlu0 %v355, 4
        %v659 = vpop.permute.xlu0 %658
        %660 = vrot.lane.b32.xlu0 %v369, 4
        %v661 = vpop.permute.xlu0 %660
        %662 = vrot.lane.b32.xlu0 %v379, 4
        %v663 = vpop.permute.xlu0 %662
        %664 = vrot.lane.b32.xlu0 %v393, 4
        %v665 = vpop.permute.xlu0 %664
        %666 = vrot.lane.b32.xlu0 %v403, 4
        %v667 = vpop.permute.xlu0 %666
        %668 = vrot.lane.b32.xlu0 %v417, 4
        %v669 = vpop.permute.xlu0 %668
        %670 = vrot.lane.b32.xlu0 %v427, 4
        %v671 = vpop.permute.xlu0 %670
        %672 = vrot.lane.b32.xlu0 %v441, 4
        %v673 = vpop.permute.xlu0 %672
        %674 = vrot.lane.b32.xlu0 %v451, 4
        %v675 = vpop.permute.xlu0 %674
        %676 = vrot.lane.b32.xlu0 %v465, 4
        %v677 = vpop.permute.xlu0 %676
        %678 = vrot.lane.b32.xlu0 %v475, 4
        %v679 = vpop.permute.xlu0 %678
        %680 = vrot.lane.b32.xlu0 %v489, 4
        %v681 = vpop.permute.xlu0 %680
        %682 = vrot.lane.b32.xlu0 %v499, 4
        %v683 = vpop.permute.xlu0 %682
        %684 = vrot.lane.b32.xlu0 %v513, 4
        %v685 = vpop.permute.xlu0 %684
        %686 = vrot.lane.b32.xlu0 %v523, 4
        %v687 = vpop.permute.xlu0 %686
        %688 = vrot.lane.b32.xlu0 %v537, 4
        %v689 = vpop.permute.xlu0 %688
        %690 = vrot.lane.b32.xlu0 %v547, 4
        %v691 = vpop.permute.xlu0 %690
        %692 = vrot.lane.b32.xlu0 %v561, 4
        %v693 = vpop.permute.xlu0 %692
        %694 = vrot.lane.b32.xlu0 %v571, 4
        %v695 = vpop.permute.xlu0 %694
        %696 = vrot.lane.b32.xlu0 %v585, 4
        %v697 = vpop.permute.xlu0 %696
        %698 = vrot.lane.b32.xlu0 %v595, 4
        %v699 = vpop.permute.xlu0 %698
        %700 = vrot.lane.b32.xlu0 %v609, 4
        %v701 = vpop.permute.xlu0 %700
        %702 = vrot.lane.b32.xlu0 %v619, 4
        %v703 = vpop.permute.xlu0 %702
        %704 = vrot.lane.b32.xlu0 %v633, 4
        %v705 = vpop.permute.xlu0 %704
        %706 = vrot.lane.b32.xlu0 %v643, 4
        %v707 = vpop.permute.xlu0 %706
        %vm740 = vcmask 60448
        %741 = vst.msk [vmem:[#allocation2] sm:$0xf] %vm740, %v645
        %742 = vst.msk [vmem:[#allocation2 + $0x4] sm:$0xf] %vm740, %v647
        %743 = vst.msk [vmem:[#allocation2 + $0x8] sm:$0xf] %vm740, %v649
        %744 = vst.msk [vmem:[#allocation2 + $0xc] sm:$0xf] %vm740, %v651
        %745 = vst.msk [vmem:[#allocation2 + $0x10] sm:$0xf] %vm740, %v653
        %746 = vst.msk [vmem:[#allocation2 + $0x14] sm:$0xf] %vm740, %v655
        %747 = vst.msk [vmem:[#allocation2 + $0x18] sm:$0xf] %vm740, %v657
        %748 = vst.msk [vmem:[#allocation2 + $0x1c] sm:$0xf] %vm740, %v659
        %749 = vst.msk [vmem:[#allocation2 + $0x20] sm:$0xf] %vm740, %v661
        %750 = vst.msk [vmem:[#allocation2 + $0x24] sm:$0xf] %vm740, %v663
        %751 = vst.msk [vmem:[#allocation2 + $0x28] sm:$0xf] %vm740, %v665
        %752 = vst.msk [vmem:[#allocation2 + $0x2c] sm:$0xf] %vm740, %v667
        %753 = vst.msk [vmem:[#allocation2 + $0x30] sm:$0xf] %vm740, %v669
        %754 = vst.msk [vmem:[#allocation2 + $0x34] sm:$0xf] %vm740, %v671
        %755 = vst.msk [vmem:[#allocation2 + $0x38] sm:$0xf] %vm740, %v673
        %756 = vst.msk [vmem:[#allocation2 + $0x3c] sm:$0xf] %vm740, %v675
        %757 = vst.msk [vmem:[#allocation2 + $0x40] sm:$0xf] %vm740, %v677
        %758 = vst.msk [vmem:[#allocation2 + $0x44] sm:$0xf] %vm740, %v679
        %759 = vst.msk [vmem:[#allocation2 + $0x48] sm:$0xf] %vm740, %v681
        %760 = vst.msk [vmem:[#allocation2 + $0x4c] sm:$0xf] %vm740, %v683
        %761 = vst.msk [vmem:[#allocation2 + $0x50] sm:$0xf] %vm740, %v685
        %762 = vst.msk [vmem:[#allocation2 + $0x54] sm:$0xf] %vm740, %v687
        %763 = vst.msk [vmem:[#allocation2 + $0x58] sm:$0xf] %vm740, %v689
        %764 = vst.msk [vmem:[#allocation2 + $0x5c] sm:$0xf] %vm740, %v691
        %765 = vst.msk [vmem:[#allocation2 + $0x60] sm:$0xf] %vm740, %v693
        %766 = vst.msk [vmem:[#allocation2 + $0x64] sm:$0xf] %vm740, %v695
        %767 = vst.msk [vmem:[#allocation2 + $0x68] sm:$0xf] %vm740, %v697
        %768 = vst.msk [vmem:[#allocation2 + $0x6c] sm:$0xf] %vm740, %v699
        %769 = vst.msk [vmem:[#allocation2 + $0x70] sm:$0xf] %vm740, %v701
        %770 = vst.msk [vmem:[#allocation2 + $0x74] sm:$0xf] %vm740, %v703
        %771 = vst.msk [vmem:[#allocation2 + $0x78] sm:$0xf] %vm740, %v705
        %772 = vst.msk [vmem:[#allocation2 + $0x7c] sm:$0xf] %vm740, %v707
        %vm821 = vcmask 1042432
        %vm822 = vcmask 1046532
        %vm823 = vmor %vm821, %vm822
        %v824 = vrot.slane %v170, 5
        %v825 = vrot.slane %v824, 4
        %v826 = vrot.slane %v171, 5
        %v827 = vsel %vm823, %v825, %v826
        %v828 = vrot.slane %v826, 4
        %v829 = vrot.slane %v172, 5
        %v830 = vsel %vm823, %v828, %v829
        %v831 = vrot.slane %v173, 5
        %v832 = vrot.slane %v831, 4
        %v833 = vrot.slane %v174, 5
        %v834 = vsel %vm823, %v832, %v833
        %v835 = vrot.slane %v833, 4
        %v836 = vrot.slane %v175, 5
        %v837 = vsel %vm823, %v835, %v836
        %v838 = vrot.slane %v176, 5
        %v839 = vrot.slane %v838, 4
        %v840 = vrot.slane %v177, 5
        %v841 = vsel %vm823, %v839, %v840
        %v842 = vrot.slane %v840, 4
        %v843 = vrot.slane %v178, 5
        %v844 = vsel %vm823, %v842, %v843
        %v845 = vrot.slane %v179, 5
        %v846 = vrot.slane %v845, 4
        %v847 = vrot.slane %v180, 5
        %v848 = vsel %vm823, %v846, %v847
        %v849 = vrot.slane %v847, 4
        %v850 = vrot.slane %v181, 5
        %v851 = vsel %vm823, %v849, %v850
        %v852 = vrot.slane %v182, 5
        %v853 = vrot.slane %v852, 4
        %v854 = vrot.slane %v183, 5
        %v855 = vsel %vm823, %v853, %v854
        %v856 = vrot.slane %v854, 4
        %v857 = vrot.slane %v184, 5
        %v858 = vsel %vm823, %v856, %v857
        %v859 = vrot.slane %v185, 5
        %v860 = vrot.slane %v859, 4
        %v861 = vrot.slane %v186, 5
        %v862 = vsel %vm823, %v860, %v861
        %v863 = vrot.slane %v861, 4
        %v864 = vrot.slane %v187, 5
        %v865 = vsel %vm823, %v863, %v864
        %v866 = vrot.slane %v188, 5
        %v867 = vrot.slane %v866, 4
        %v868 = vrot.slane %v189, 5
        %v869 = vsel %vm823, %v867, %v868
        %v870 = vrot.slane %v868, 4
        %v871 = vrot.slane %v190, 5
        %v872 = vsel %vm823, %v870, %v871
        %v873 = vrot.slane %v191, 5
        %v874 = vrot.slane %v873, 4
        %v875 = vrot.slane %v192, 5
        %v876 = vsel %vm823, %v874, %v875
        %v877 = vrot.slane %v875, 4
        %v878 = vrot.slane %v193, 5
        %v879 = vsel %vm823, %v877, %v878
        %v880 = vrot.slane %v194, 5
        %v881 = vrot.slane %v880, 4
        %v882 = vrot.slane %v195, 5
        %v883 = vsel %vm823, %v881, %v882
        %v884 = vrot.slane %v882, 4
        %v885 = vrot.slane %v196, 5
        %v886 = vsel %vm823, %v884, %v885
        %v887 = vrot.slane %v197, 5
        %v888 = vrot.slane %v887, 4
        %v889 = vrot.slane %v198, 5
        %v890 = vsel %vm823, %v888, %v889
        %v891 = vrot.slane %v889, 4
        %v892 = vrot.slane %v199, 5
        %v893 = vsel %vm823, %v891, %v892
        %v894 = vrot.slane %v200, 5
        %v895 = vrot.slane %v894, 4
        %v896 = vrot.slane %v201, 5
        %v897 = vsel %vm823, %v895, %v896
        %v898 = vrot.slane %v896, 4
        %v899 = vrot.slane %v202, 5
        %v900 = vsel %vm823, %v898, %v899
        %v901 = vrot.slane %v203, 5
        %v902 = vrot.slane %v901, 4
        %v903 = vrot.slane %v204, 5
        %v904 = vsel %vm823, %v902, %v903
        %v905 = vrot.slane %v903, 4
        %v906 = vrot.slane %v205, 5
        %v907 = vsel %vm823, %v905, %v906
        %v908 = vrot.slane %v206, 5
        %v909 = vrot.slane %v908, 4
        %v910 = vrot.slane %v207, 5
        %v911 = vsel %vm823, %v909, %v910
        %v912 = vrot.slane %v910, 4
        %v913 = vrot.slane %v208, 5
        %v914 = vsel %vm823, %v912, %v913
        %v915 = vrot.slane %v209, 5
        %v916 = vrot.slane %v915, 4
        %v917 = vrot.slane %v210, 5
        %v918 = vsel %vm823, %v916, %v917
        %v919 = vrot.slane %v917, 4
        %v920 = vrot.slane %v211, 5
        %v921 = vsel %vm823, %v919, %v920
        %v922 = vrot.slane %v212, 5
        %v923 = vrot.slane %v922, 4
        %v924 = vrot.slane %v213, 5
        %v925 = vsel %vm823, %v923, %v924
        %v926 = vrot.slane %v924, 4
        %v927 = vrot.slane %v214, 5
        %v928 = vsel %vm823, %v926, %v927
        %v929 = vrot.slane %v215, 5
        %v930 = vrot.slane %v929, 4
        %v931 = vrot.slane %v216, 5
        %v932 = vsel %vm823, %v930, %v931
        %v933 = vrot.slane %v931, 4
        %v934 = vrot.slane %v217, 5
        %v935 = vsel %vm823, %v933, %v934
        %936 = vrot.lane.b32.xlu0 %v827, 8
        %v937 = vpop.permute.xlu0 %936
        %938 = vrot.lane.b32.xlu0 %v830, 8
        %v939 = vpop.permute.xlu0 %938
        %940 = vrot.lane.b32.xlu0 %v834, 8
        %v941 = vpop.permute.xlu0 %940
        %942 = vrot.lane.b32.xlu0 %v837, 8
        %v943 = vpop.permute.xlu0 %942
        %944 = vrot.lane.b32.xlu0 %v841, 8
        %v945 = vpop.permute.xlu0 %944
        %946 = vrot.lane.b32.xlu0 %v844, 8
        %v947 = vpop.permute.xlu0 %946
        %948 = vrot.lane.b32.xlu0 %v848, 8
        %v949 = vpop.permute.xlu0 %948
        %950 = vrot.lane.b32.xlu0 %v851, 8
        %v951 = vpop.permute.xlu0 %950
        %952 = vrot.lane.b32.xlu0 %v855, 8
        %v953 = vpop.permute.xlu0 %952
        %954 = vrot.lane.b32.xlu0 %v858, 8
        %v955 = vpop.permute.xlu0 %954
        %956 = vrot.lane.b32.xlu0 %v862, 8
        %v957 = vpop.permute.xlu0 %956
        %958 = vrot.lane.b32.xlu0 %v865, 8
        %v959 = vpop.permute.xlu0 %958
        %960 = vrot.lane.b32.xlu0 %v869, 8
        %v961 = vpop.permute.xlu0 %960
        %962 = vrot.lane.b32.xlu0 %v872, 8
        %v963 = vpop.permute.xlu0 %962
        %964 = vrot.lane.b32.xlu0 %v876, 8
        %v965 = vpop.permute.xlu0 %964
        %966 = vrot.lane.b32.xlu0 %v879, 8
        %v967 = vpop.permute.xlu0 %966
        %968 = vrot.lane.b32.xlu0 %v883, 8
        %v969 = vpop.permute.xlu0 %968
        %970 = vrot.lane.b32.xlu0 %v886, 8
        %v971 = vpop.permute.xlu0 %970
        %972 = vrot.lane.b32.xlu0 %v890, 8
        %v973 = vpop.permute.xlu0 %972
        %974 = vrot.lane.b32.xlu0 %v893, 8
        %v975 = vpop.permute.xlu0 %974
        %976 = vrot.lane.b32.xlu0 %v897, 8
        %v977 = vpop.permute.xlu0 %976
        %978 = vrot.lane.b32.xlu0 %v900, 8
        %v979 = vpop.permute.xlu0 %978
        %980 = vrot.lane.b32.xlu0 %v904, 8
        %v981 = vpop.permute.xlu0 %980
        %982 = vrot.lane.b32.xlu0 %v907, 8
        %v983 = vpop.permute.xlu0 %982
        %984 = vrot.lane.b32.xlu0 %v911, 8
        %v985 = vpop.permute.xlu0 %984
        %986 = vrot.lane.b32.xlu0 %v914, 8
        %v987 = vpop.permute.xlu0 %986
        %988 = vrot.lane.b32.xlu0 %v918, 8
        %v989 = vpop.permute.xlu0 %988
        %990 = vrot.lane.b32.xlu0 %v921, 8
        %v991 = vpop.permute.xlu0 %990
        %992 = vrot.lane.b32.xlu0 %v925, 8
        %v993 = vpop.permute.xlu0 %992
        %994 = vrot.lane.b32.xlu0 %v928, 8
        %v995 = vpop.permute.xlu0 %994
        %996 = vrot.lane.b32.xlu0 %v932, 8
        %v997 = vpop.permute.xlu0 %996
        %998 = vrot.lane.b32.xlu0 %v935, 8
        %v999 = vpop.permute.xlu0 %998
        %vm1032 = vcmask 93248
        %1033 = vst.msk [vmem:[#allocation2] sm:$0xf] %vm1032, %v937
        %1034 = vst.msk [vmem:[#allocation2 + $0x4] sm:$0xf] %vm1032, %v939
        %1035 = vst.msk [vmem:[#allocation2 + $0x8] sm:$0xf] %vm1032, %v941
        %1036 = vst.msk [vmem:[#allocation2 + $0xc] sm:$0xf] %vm1032, %v943
        %1037 = vst.msk [vmem:[#allocation2 + $0x10] sm:$0xf] %vm1032, %v945
        %1038 = vst.msk [vmem:[#allocation2 + $0x14] sm:$0xf] %vm1032, %v947
        %1039 = vst.msk [vmem:[#allocation2 + $0x18] sm:$0xf] %vm1032, %v949
        %1040 = vst.msk [vmem:[#allocation2 + $0x1c] sm:$0xf] %vm1032, %v951
        %1041 = vst.msk [vmem:[#allocation2 + $0x20] sm:$0xf] %vm1032, %v953
        %1042 = vst.msk [vmem:[#allocation2 + $0x24] sm:$0xf] %vm1032, %v955
        %1043 = vst.msk [vmem:[#allocation2 + $0x28] sm:$0xf] %vm1032, %v957
        %1044 = vst.msk [vmem:[#allocation2 + $0x2c] sm:$0xf] %vm1032, %v959
        %1045 = vst.msk [vmem:[#allocation2 + $0x30] sm:$0xf] %vm1032, %v961
        %1046 = vst.msk [vmem:[#allocation2 + $0x34] sm:$0xf] %vm1032, %v963
        %1047 = vst.msk [vmem:[#allocation2 + $0x38] sm:$0xf] %vm1032, %v965
        %1048 = vst.msk [vmem:[#allocation2 + $0x3c] sm:$0xf] %vm1032, %v967
        %1049 = vst.msk [vmem:[#allocation2 + $0x40] sm:$0xf] %vm1032, %v969
        %1050 = vst.msk [vmem:[#allocation2 + $0x44] sm:$0xf] %vm1032, %v971
        %1051 = vst.msk [vmem:[#allocation2 + $0x48] sm:$0xf] %vm1032, %v973
        %1052 = vst.msk [vmem:[#allocation2 + $0x4c] sm:$0xf] %vm1032, %v975
        %1053 = vst.msk [vmem:[#allocation2 + $0x50] sm:$0xf] %vm1032, %v977
        %1054 = vst.msk [vmem:[#allocation2 + $0x54] sm:$0xf] %vm1032, %v979
        %1055 = vst.msk [vmem:[#allocation2 + $0x58] sm:$0xf] %vm1032, %v981
        %1056 = vst.msk [vmem:[#allocation2 + $0x5c] sm:$0xf] %vm1032, %v983
        %1057 = vst.msk [vmem:[#allocation2 + $0x60] sm:$0xf] %vm1032, %v985
        %1058 = vst.msk [vmem:[#allocation2 + $0x64] sm:$0xf] %vm1032, %v987
        %1059 = vst.msk [vmem:[#allocation2 + $0x68] sm:$0xf] %vm1032, %v989
        %1060 = vst.msk [vmem:[#allocation2 + $0x6c] sm:$0xf] %vm1032, %v991
        %1061 = vst.msk [vmem:[#allocation2 + $0x70] sm:$0xf] %vm1032, %v993
        %1062 = vst.msk [vmem:[#allocation2 + $0x74] sm:$0xf] %vm1032, %v995
        %1063 = vst.msk [vmem:[#allocation2 + $0x78] sm:$0xf] %vm1032, %v997
        %1064 = vst.msk [vmem:[#allocation2 + $0x7c] sm:$0xf] %vm1032, %v999
        %1067 = vrot.lane.b32.xlu0 %v173, 12
        %v1068 = vpop.permute.xlu0 %1067
        %1069 = vrot.lane.b32.xlu0 %v174, 12
        %v1070 = vpop.permute.xlu0 %1069
        %1071 = vrot.lane.b32.xlu0 %v176, 12
        %v1072 = vpop.permute.xlu0 %1071
        %1073 = vrot.lane.b32.xlu0 %v177, 12
        %v1074 = vpop.permute.xlu0 %1073
        %1075 = vrot.lane.b32.xlu0 %v179, 12
        %v1076 = vpop.permute.xlu0 %1075
        %1077 = vrot.lane.b32.xlu0 %v180, 12
        %v1078 = vpop.permute.xlu0 %1077
        %1079 = vrot.lane.b32.xlu0 %v182, 12
        %v1080 = vpop.permute.xlu0 %1079
        %1081 = vrot.lane.b32.xlu0 %v183, 12
        %v1082 = vpop.permute.xlu0 %1081
        %1083 = vrot.lane.b32.xlu0 %v185, 12
        %v1084 = vpop.permute.xlu0 %1083
        %1085 = vrot.lane.b32.xlu0 %v186, 12
        %v1086 = vpop.permute.xlu0 %1085
        %1087 = vrot.lane.b32.xlu0 %v188, 12
        %v1088 = vpop.permute.xlu0 %1087
        %1089 = vrot.lane.b32.xlu0 %v189, 12
        %v1090 = vpop.permute.xlu0 %1089
        %1091 = vrot.lane.b32.xlu0 %v191, 12
        %v1092 = vpop.permute.xlu0 %1091
        %1093 = vrot.lane.b32.xlu0 %v192, 12
        %v1094 = vpop.permute.xlu0 %1093
        %1095 = vrot.lane.b32.xlu0 %v194, 12
        %v1096 = vpop.permute.xlu0 %1095
        %1097 = vrot.lane.b32.xlu0 %v195, 12
        %v1098 = vpop.permute.xlu0 %1097
        %1099 = vrot.lane.b32.xlu0 %v197, 12
        %v1100 = vpop.permute.xlu0 %1099
        %1101 = vrot.lane.b32.xlu0 %v198, 12
        %v1102 = vpop.permute.xlu0 %1101
        %1103 = vrot.lane.b32.xlu0 %v200, 12
        %v1104 = vpop.permute.xlu0 %1103
        %1105 = vrot.lane.b32.xlu0 %v201, 12
        %v1106 = vpop.permute.xlu0 %1105
        %1107 = vrot.lane.b32.xlu0 %v203, 12
        %v1108 = vpop.permute.xlu0 %1107
        %1109 = vrot.lane.b32.xlu0 %v204, 12
        %v1110 = vpop.permute.xlu0 %1109
        %1111 = vrot.lane.b32.xlu0 %v206, 12
        %v1112 = vpop.permute.xlu0 %1111
        %1113 = vrot.lane.b32.xlu0 %v207, 12
        %v1114 = vpop.permute.xlu0 %1113
        %1115 = vrot.lane.b32.xlu0 %v209, 12
        %v1116 = vpop.permute.xlu0 %1115
        %1117 = vrot.lane.b32.xlu0 %v210, 12
        %v1118 = vpop.permute.xlu0 %1117
        %1119 = vrot.lane.b32.xlu0 %v212, 12
        %v1120 = vpop.permute.xlu0 %1119
        %1121 = vrot.lane.b32.xlu0 %v213, 12
        %v1122 = vpop.permute.xlu0 %1121
        %1123 = vrot.lane.b32.xlu0 %v215, 12
        %v1124 = vpop.permute.xlu0 %1123
        %1125 = vrot.lane.b32.xlu0 %v216, 12
        %v1126 = vpop.permute.xlu0 %1125
        %1127 = vrot.lane.b32.xlu0 %v218, 12
        %v1128 = vpop.permute.xlu0 %1127
        %1129 = vrot.lane.b32.xlu0 %v219, 12
        %v1130 = vpop.permute.xlu0 %1129
        %vm1163 = vcmask 126048
        %1164 = vst.msk [vmem:[#allocation2] sm:$0xf] %vm1163, %v1068
        %1165 = vst.msk [vmem:[#allocation2 + $0x4] sm:$0xf] %vm1163, %v1070
        %1166 = vst.msk [vmem:[#allocation2 + $0x8] sm:$0xf] %vm1163, %v1072
        %1167 = vst.msk [vmem:[#allocation2 + $0xc] sm:$0xf] %vm1163, %v1074
        %1168 = vst.msk [vmem:[#allocation2 + $0x10] sm:$0xf] %vm1163, %v1076
        %1169 = vst.msk [vmem:[#allocation2 + $0x14] sm:$0xf] %vm1163, %v1078
        %1170 = vst.msk [vmem:[#allocation2 + $0x18] sm:$0xf] %vm1163, %v1080
        %1171 = vst.msk [vmem:[#allocation2 + $0x1c] sm:$0xf] %vm1163, %v1082
        %1172 = vst.msk [vmem:[#allocation2 + $0x20] sm:$0xf] %vm1163, %v1084
        %1173 = vst.msk [vmem:[#allocation2 + $0x24] sm:$0xf] %vm1163, %v1086
        %1174 = vst.msk [vmem:[#allocation2 + $0x28] sm:$0xf] %vm1163, %v1088
        %1175 = vst.msk [vmem:[#allocation2 + $0x2c] sm:$0xf] %vm1163, %v1090
        %1176 = vst.msk [vmem:[#allocation2 + $0x30] sm:$0xf] %vm1163, %v1092
        %1177 = vst.msk [vmem:[#allocation2 + $0x34] sm:$0xf] %vm1163, %v1094
        %1178 = vst.msk [vmem:[#allocation2 + $0x38] sm:$0xf] %vm1163, %v1096
        %1179 = vst.msk [vmem:[#allocation2 + $0x3c] sm:$0xf] %vm1163, %v1098
        %1180 = vst.msk [vmem:[#allocation2 + $0x40] sm:$0xf] %vm1163, %v1100
        %1181 = vst.msk [vmem:[#allocation2 + $0x44] sm:$0xf] %vm1163, %v1102
        %1182 = vst.msk [vmem:[#allocation2 + $0x48] sm:$0xf] %vm1163, %v1104
        %1183 = vst.msk [vmem:[#allocation2 + $0x4c] sm:$0xf] %vm1163, %v1106
        %1184 = vst.msk [vmem:[#allocation2 + $0x50] sm:$0xf] %vm1163, %v1108
        %1185 = vst.msk [vmem:[#allocation2 + $0x54] sm:$0xf] %vm1163, %v1110
        %1186 = vst.msk [vmem:[#allocation2 + $0x58] sm:$0xf] %vm1163, %v1112
        %1187 = vst.msk [vmem:[#allocation2 + $0x5c] sm:$0xf] %vm1163, %v1114
        %1188 = vst.msk [vmem:[#allocation2 + $0x60] sm:$0xf] %vm1163, %v1116
        %1189 = vst.msk [vmem:[#allocation2 + $0x64] sm:$0xf] %vm1163, %v1118
        %1190 = vst.msk [vmem:[#allocation2 + $0x68] sm:$0xf] %vm1163, %v1120
        %1191 = vst.msk [vmem:[#allocation2 + $0x6c] sm:$0xf] %vm1163, %v1122
        %1192 = vst.msk [vmem:[#allocation2 + $0x70] sm:$0xf] %vm1163, %v1124
        %1193 = vst.msk [vmem:[#allocation2 + $0x74] sm:$0xf] %vm1163, %v1126
        %1194 = vst.msk [vmem:[#allocation2 + $0x78] sm:$0xf] %vm1163, %v1128
        %1195 = vst.msk [vmem:[#allocation2 + $0x7c] sm:$0xf] %vm1163, %v1130
        %v1197 = vshrl.u32 %v218, 16
        %v1199 = vrot.slane %v1197, 4
        %v1200 = vshll.u32 %v218, 16
        %v1202 = vrot.slane %v1200, 5
        %v1203 = vor.u32 %v1199, %v1202
        %v1204 = vrot.slane %v1203, 4
        %v1206 = vshll.u32 %v219, 16
        %v1208 = vrot.slane %v1206, 5
        %v1209 = vsel %vm259, %v1204, %v1208
        %v1210 = vshrl.u32 %v219, 16
        %v1212 = vrot.slane %v1210, 4
        %v1213 = vor.u32 %v1212, %v1208
        %v1214 = vrot.slane %v1213, 4
        %v1216 = vshll.u32 %v220, 16
        %v1218 = vrot.slane %v1216, 5
        %v1219 = vsel %vm259, %v1214, %v1218
        %1220 = vrot.lane.b32.xlu0 %v297, 16
        %v1221 = vpop.permute.xlu0 %1220
        %1222 = vrot.lane.b32.xlu0 %v307, 16
        %v1223 = vpop.permute.xlu0 %1222
        %1224 = vrot.lane.b32.xlu0 %v321, 16
        %v1225 = vpop.permute.xlu0 %1224
        %1226 = vrot.lane.b32.xlu0 %v331, 16
        %v1227 = vpop.permute.xlu0 %1226
        %1228 = vrot.lane.b32.xlu0 %v345, 16
        %v1229 = vpop.permute.xlu0 %1228
        %1230 = vrot.lane.b32.xlu0 %v355, 16
        %v1231 = vpop.permute.xlu0 %1230
        %1232 = vrot.lane.b32.xlu0 %v369, 16
        %v1233 = vpop.permute.xlu0 %1232
        %1234 = vrot.lane.b32.xlu0 %v379, 16
        %v1235 = vpop.permute.xlu0 %1234
        %1236 = vrot.lane.b32.xlu0 %v393, 16
        %v1237 = vpop.permute.xlu0 %1236
        %1238 = vrot.lane.b32.xlu0 %v403, 16
        %v1239 = vpop.permute.xlu0 %1238
        %1240 = vrot.lane.b32.xlu0 %v417, 16
        %v1241 = vpop.permute.xlu0 %1240
        %1242 = vrot.lane.b32.xlu0 %v427, 16
        %v1243 = vpop.permute.xlu0 %1242
        %1244 = vrot.lane.b32.xlu0 %v441, 16
        %v1245 = vpop.permute.xlu0 %1244
        %1246 = vrot.lane.b32.xlu0 %v451, 16
        %v1247 = vpop.permute.xlu0 %1246
        %1248 = vrot.lane.b32.xlu0 %v465, 16
        %v1249 = vpop.permute.xlu0 %1248
        %1250 = vrot.lane.b32.xlu0 %v475, 16
        %v1251 = vpop.permute.xlu0 %1250
        %1252 = vrot.lane.b32.xlu0 %v489, 16
        %v1253 = vpop.permute.xlu0 %1252
        %1254 = vrot.lane.b32.xlu0 %v499, 16
        %v1255 = vpop.permute.xlu0 %1254
        %1256 = vrot.lane.b32.xlu0 %v513, 16
        %v1257 = vpop.permute.xlu0 %1256
        %1258 = vrot.lane.b32.xlu0 %v523, 16
        %v1259 = vpop.permute.xlu0 %1258
        %1260 = vrot.lane.b32.xlu0 %v537, 16
        %v1261 = vpop.permute.xlu0 %1260
        %1262 = vrot.lane.b32.xlu0 %v547, 16
        %v1263 = vpop.permute.xlu0 %1262
        %1264 = vrot.lane.b32.xlu0 %v561, 16
        %v1265 = vpop.permute.xlu0 %1264
        %1266 = vrot.lane.b32.xlu0 %v571, 16
        %v1267 = vpop.permute.xlu0 %1266
        %1268 = vrot.lane.b32.xlu0 %v585, 16
        %v1269 = vpop.permute.xlu0 %1268
        %1270 = vrot.lane.b32.xlu0 %v595, 16
        %v1271 = vpop.permute.xlu0 %1270
        %1272 = vrot.lane.b32.xlu0 %v609, 16
        %v1273 = vpop.permute.xlu0 %1272
        %1274 = vrot.lane.b32.xlu0 %v619, 16
        %v1275 = vpop.permute.xlu0 %1274
        %1276 = vrot.lane.b32.xlu0 %v633, 16
        %v1277 = vpop.permute.xlu0 %1276
        %1278 = vrot.lane.b32.xlu0 %v643, 16
        %v1279 = vpop.permute.xlu0 %1278
        %1280 = vrot.lane.b32.xlu0 %v1209, 16
        %v1281 = vpop.permute.xlu0 %1280
        %1282 = vrot.lane.b32.xlu0 %v1219, 16
        %v1283 = vpop.permute.xlu0 %1282
        %vm1316 = vcmask 158848
        %1317 = vst.msk [vmem:[#allocation2] sm:$0xf] %vm1316, %v1221
        %1318 = vst.msk [vmem:[#allocation2 + $0x4] sm:$0xf] %vm1316, %v1223
        %1319 = vst.msk [vmem:[#allocation2 + $0x8] sm:$0xf] %vm1316, %v1225
        %1320 = vst.msk [vmem:[#allocation2 + $0xc] sm:$0xf] %vm1316, %v1227
        %1321 = vst.msk [vmem:[#allocation2 + $0x10] sm:$0xf] %vm1316, %v1229
        %1322 = vst.msk [vmem:[#allocation2 + $0x14] sm:$0xf] %vm1316, %v1231
        %1323 = vst.msk [vmem:[#allocation2 + $0x18] sm:$0xf] %vm1316, %v1233
        %1324 = vst.msk [vmem:[#allocation2 + $0x1c] sm:$0xf] %vm1316, %v1235
        %1325 = vst.msk [vmem:[#allocation2 + $0x20] sm:$0xf] %vm1316, %v1237
        %1326 = vst.msk [vmem:[#allocation2 + $0x24] sm:$0xf] %vm1316, %v1239
        %1327 = vst.msk [vmem:[#allocation2 + $0x28] sm:$0xf] %vm1316, %v1241
        %1328 = vst.msk [vmem:[#allocation2 + $0x2c] sm:$0xf] %vm1316, %v1243
        %1329 = vst.msk [vmem:[#allocation2 + $0x30] sm:$0xf] %vm1316, %v1245
        %1330 = vst.msk [vmem:[#allocation2 + $0x34] sm:$0xf] %vm1316, %v1247
        %1331 = vst.msk [vmem:[#allocation2 + $0x38] sm:$0xf] %vm1316, %v1249
        %1332 = vst.msk [vmem:[#allocation2 + $0x3c] sm:$0xf] %vm1316, %v1251
        %1333 = vst.msk [vmem:[#allocation2 + $0x40] sm:$0xf] %vm1316, %v1253
        %1334 = vst.msk [vmem:[#allocation2 + $0x44] sm:$0xf] %vm1316, %v1255
        %1335 = vst.msk [vmem:[#allocation2 + $0x48] sm:$0xf] %vm1316, %v1257
        %1336 = vst.msk [vmem:[#allocation2 + $0x4c] sm:$0xf] %vm1316, %v1259
        %1337 = vst.msk [vmem:[#allocation2 + $0x50] sm:$0xf] %vm1316, %v1261
        %1338 = vst.msk [vmem:[#allocation2 + $0x54] sm:$0xf] %vm1316, %v1263
        %1339 = vst.msk [vmem:[#allocation2 + $0x58] sm:$0xf] %vm1316, %v1265
        %1340 = vst.msk [vmem:[#allocation2 + $0x5c] sm:$0xf] %vm1316, %v1267
        %1341 = vst.msk [vmem:[#allocation2 + $0x60] sm:$0xf] %vm1316, %v1269
        %1342 = vst.msk [vmem:[#allocation2 + $0x64] sm:$0xf] %vm1316, %v1271
        %1343 = vst.msk [vmem:[#allocation2 + $0x68] sm:$0xf] %vm1316, %v1273
        %1344 = vst.msk [vmem:[#allocation2 + $0x6c] sm:$0xf] %vm1316, %v1275
        %1345 = vst.msk [vmem:[#allocation2 + $0x70] sm:$0xf] %vm1316, %v1277
        %1346 = vst.msk [vmem:[#allocation2 + $0x74] sm:$0xf] %vm1316, %v1279
        %1347 = vst.msk [vmem:[#allocation2 + $0x78] sm:$0xf] %vm1316, %v1281
        %1348 = vst.msk [vmem:[#allocation2 + $0x7c] sm:$0xf] %vm1316, %v1283
        %v1350 = vrot.slane %v218, 5
        %v1351 = vrot.slane %v1350, 4
        %v1352 = vrot.slane %v219, 5
        %v1353 = vsel %vm823, %v1351, %v1352
        %v1354 = vrot.slane %v1352, 4
        %v1355 = vrot.slane %v220, 5
        %v1356 = vsel %vm823, %v1354, %v1355
        %1357 = vrot.lane.b32.xlu0 %v834, 20
        %v1358 = vpop.permute.xlu0 %1357
        %1359 = vrot.lane.b32.xlu0 %v837, 20
        %v1360 = vpop.permute.xlu0 %1359
        %1361 = vrot.lane.b32.xlu0 %v841, 20
        %v1362 = vpop.permute.xlu0 %1361
        %1363 = vrot.lane.b32.xlu0 %v844, 20
        %v1364 = vpop.permute.xlu0 %1363
        %1365 = vrot.lane.b32.xlu0 %v848, 20
        %v1366 = vpop.permute.xlu0 %1365
        %1367 = vrot.lane.b32.xlu0 %v851, 20
        %v1368 = vpop.permute.xlu0 %1367
        %1369 = vrot.lane.b32.xlu0 %v855, 20
        %v1370 = vpop.permute.xlu0 %1369
        %1371 = vrot.lane.b32.xlu0 %v858, 20
        %v1372 = vpop.permute.xlu0 %1371
        %1373 = vrot.lane.b32.xlu0 %v862, 20
        %v1374 = vpop.permute.xlu0 %1373
        %1375 = vrot.lane.b32.xlu0 %v865, 20
        %v1376 = vpop.permute.xlu0 %1375
        %1377 = vrot.lane.b32.xlu0 %v869, 20
        %v1378 = vpop.permute.xlu0 %1377
        %1379 = vrot.lane.b32.xlu0 %v872, 20
        %v1380 = vpop.permute.xlu0 %1379
        %1381 = vrot.lane.b32.xlu0 %v876, 20
        %v1382 = vpop.permute.xlu0 %1381
        %1383 = vrot.lane.b32.xlu0 %v879, 20
        %v1384 = vpop.permute.xlu0 %1383
        %1385 = vrot.lane.b32.xlu0 %v883, 20
        %v1386 = vpop.permute.xlu0 %1385
        %1387 = vrot.lane.b32.xlu0 %v886, 20
        %v1388 = vpop.permute.xlu0 %1387
        %1389 = vrot.lane.b32.xlu0 %v890, 20
        %v1390 = vpop.permute.xlu0 %1389
        %1391 = vrot.lane.b32.xlu0 %v893, 20
        %v1392 = vpop.permute.xlu0 %1391
        %1393 = vrot.lane.b32.xlu0 %v897, 20
        %v1394 = vpop.permute.xlu0 %1393
        %1395 = vrot.lane.b32.xlu0 %v900, 20
        %v1396 = vpop.permute.xlu0 %1395
        %1397 = vrot.lane.b32.xlu0 %v904, 20
        %v1398 = vpop.permute.xlu0 %1397
        %1399 = vrot.lane.b32.xlu0 %v907, 20
        %v1400 = vpop.permute.xlu0 %1399
        %1401 = vrot.lane.b32.xlu0 %v911, 20
        %v1402 = vpop.permute.xlu0 %1401
        %1403 = vrot.lane.b32.xlu0 %v914, 20
        %v1404 = vpop.permute.xlu0 %1403
        %1405 = vrot.lane.b32.xlu0 %v918, 20
        %v1406 = vpop.permute.xlu0 %1405
        %1407 = vrot.lane.b32.xlu0 %v921, 20
        %v1408 = vpop.permute.xlu0 %1407
        %1409 = vrot.lane.b32.xlu0 %v925, 20
        %v1410 = vpop.permute.xlu0 %1409
        %1411 = vrot.lane.b32.xlu0 %v928, 20
        %v1412 = vpop.permute.xlu0 %1411
        %1413 = vrot.lane.b32.xlu0 %v932, 20
        %v1414 = vpop.permute.xlu0 %1413
        %1415 = vrot.lane.b32.xlu0 %v935, 20
        %v1416 = vpop.permute.xlu0 %1415
        %1417 = vrot.lane.b32.xlu0 %v1353, 20
        %v1418 = vpop.permute.xlu0 %1417
        %1419 = vrot.lane.b32.xlu0 %v1356, 20
        %v1420 = vpop.permute.xlu0 %1419
        %vm1453 = vcmask 191648
        %1454 = vst.msk [vmem:[#allocation2] sm:$0xf] %vm1453, %v1358
        %1455 = vst.msk [vmem:[#allocation2 + $0x4] sm:$0xf] %vm1453, %v1360
        %1456 = vst.msk [vmem:[#allocation2 + $0x8] sm:$0xf] %vm1453, %v1362
        %1457 = vst.msk [vmem:[#allocation2 + $0xc] sm:$0xf] %vm1453, %v1364
        %1458 = vst.msk [vmem:[#allocation2 + $0x10] sm:$0xf] %vm1453, %v1366
        %1459 = vst.msk [vmem:[#allocation2 + $0x14] sm:$0xf] %vm1453, %v1368
        %1460 = vst.msk [vmem:[#allocation2 + $0x18] sm:$0xf] %vm1453, %v1370
        %1461 = vst.msk [vmem:[#allocation2 + $0x1c] sm:$0xf] %vm1453, %v1372
        %1462 = vst.msk [vmem:[#allocation2 + $0x20] sm:$0xf] %vm1453, %v1374
        %1463 = vst.msk [vmem:[#allocation2 + $0x24] sm:$0xf] %vm1453, %v1376
        %1464 = vst.msk [vmem:[#allocation2 + $0x28] sm:$0xf] %vm1453, %v1378
        %1465 = vst.msk [vmem:[#allocation2 + $0x2c] sm:$0xf] %vm1453, %v1380
        %1466 = vst.msk [vmem:[#allocation2 + $0x30] sm:$0xf] %vm1453, %v1382
        %1467 = vst.msk [vmem:[#allocation2 + $0x34] sm:$0xf] %vm1453, %v1384
        %1468 = vst.msk [vmem:[#allocation2 + $0x38] sm:$0xf] %vm1453, %v1386
        %1469 = vst.msk [vmem:[#allocation2 + $0x3c] sm:$0xf] %vm1453, %v1388
        %1470 = vst.msk [vmem:[#allocation2 + $0x40] sm:$0xf] %vm1453, %v1390
        %1471 = vst.msk [vmem:[#allocation2 + $0x44] sm:$0xf] %vm1453, %v1392
        %1472 = vst.msk [vmem:[#allocation2 + $0x48] sm:$0xf] %vm1453, %v1394
        %1473 = vst.msk [vmem:[#allocation2 + $0x4c] sm:$0xf] %vm1453, %v1396
        %1474 = vst.msk [vmem:[#allocation2 + $0x50] sm:$0xf] %vm1453, %v1398
        %1475 = vst.msk [vmem:[#allocation2 + $0x54] sm:$0xf] %vm1453, %v1400
        %1476 = vst.msk [vmem:[#allocation2 + $0x58] sm:$0xf] %vm1453, %v1402
        %1477 = vst.msk [vmem:[#allocation2 + $0x5c] sm:$0xf] %vm1453, %v1404
        %1478 = vst.msk [vmem:[#allocation2 + $0x60] sm:$0xf] %vm1453, %v1406
        %1479 = vst.msk [vmem:[#allocation2 + $0x64] sm:$0xf] %vm1453, %v1408
        %1480 = vst.msk [vmem:[#allocation2 + $0x68] sm:$0xf] %vm1453, %v1410
        %1481 = vst.msk [vmem:[#allocation2 + $0x6c] sm:$0xf] %vm1453, %v1412
        %1482 = vst.msk [vmem:[#allocation2 + $0x70] sm:$0xf] %vm1453, %v1414
        %1483 = vst.msk [vmem:[#allocation2 + $0x74] sm:$0xf] %vm1453, %v1416
        %1484 = vst.msk [vmem:[#allocation2 + $0x78] sm:$0xf] %vm1453, %v1418
        %1485 = vst.msk [vmem:[#allocation2 + $0x7c] sm:$0xf] %vm1453, %v1420
        %1488 = vrot.lane.b32.xlu0 %v176, 24
        %v1489 = vpop.permute.xlu0 %1488
        %1490 = vrot.lane.b32.xlu0 %v177, 24
        %v1491 = vpop.permute.xlu0 %1490
        %1492 = vrot.lane.b32.xlu0 %v179, 24
        %v1493 = vpop.permute.xlu0 %1492
        %1494 = vrot.lane.b32.xlu0 %v180, 24
        %v1495 = vpop.permute.xlu0 %1494
        %1496 = vrot.lane.b32.xlu0 %v182, 24
        %v1497 = vpop.permute.xlu0 %1496
        %1498 = vrot.lane.b32.xlu0 %v183, 24
        %v1499 = vpop.permute.xlu0 %1498
        %1500 = vrot.lane.b32.xlu0 %v185, 24
        %v1501 = vpop.permute.xlu0 %1500
        %1502 = vrot.lane.b32.xlu0 %v186, 24
        %v1503 = vpop.permute.xlu0 %1502
        %1504 = vrot.lane.b32.xlu0 %v188, 24
        %v1505 = vpop.permute.xlu0 %1504
        %1506 = vrot.lane.b32.xlu0 %v189, 24
        %v1507 = vpop.permute.xlu0 %1506
        %1508 = vrot.lane.b32.xlu0 %v191, 24
        %v1509 = vpop.permute.xlu0 %1508
        %1510 = vrot.lane.b32.xlu0 %v192, 24
        %v1511 = vpop.permute.xlu0 %1510
        %1512 = vrot.lane.b32.xlu0 %v194, 24
        %v1513 = vpop.permute.xlu0 %1512
        %1514 = vrot.lane.b32.xlu0 %v195, 24
        %v1515 = vpop.permute.xlu0 %1514
        %1516 = vrot.lane.b32.xlu0 %v197, 24
        %v1517 = vpop.permute.xlu0 %1516
        %1518 = vrot.lane.b32.xlu0 %v198, 24
        %v1519 = vpop.permute.xlu0 %1518
        %1520 = vrot.lane.b32.xlu0 %v200, 24
        %v1521 = vpop.permute.xlu0 %1520
        %1522 = vrot.lane.b32.xlu0 %v201, 24
        %v1523 = vpop.permute.xlu0 %1522
        %1524 = vrot.lane.b32.xlu0 %v203, 24
        %v1525 = vpop.permute.xlu0 %1524
        %1526 = vrot.lane.b32.xlu0 %v204, 24
        %v1527 = vpop.permute.xlu0 %1526
        %1528 = vrot.lane.b32.xlu0 %v206, 24
        %v1529 = vpop.permute.xlu0 %1528
        %1530 = vrot.lane.b32.xlu0 %v207, 24
        %v1531 = vpop.permute.xlu0 %1530
        %1532 = vrot.lane.b32.xlu0 %v209, 24
        %v1533 = vpop.permute.xlu0 %1532
        %1534 = vrot.lane.b32.xlu0 %v210, 24
        %v1535 = vpop.permute.xlu0 %1534
        %1536 = vrot.lane.b32.xlu0 %v212, 24
        %v1537 = vpop.permute.xlu0 %1536
        %1538 = vrot.lane.b32.xlu0 %v213, 24
        %v1539 = vpop.permute.xlu0 %1538
        %1540 = vrot.lane.b32.xlu0 %v215, 24
        %v1541 = vpop.permute.xlu0 %1540
        %1542 = vrot.lane.b32.xlu0 %v216, 24
        %v1543 = vpop.permute.xlu0 %1542
        %1544 = vrot.lane.b32.xlu0 %v218, 24
        %v1545 = vpop.permute.xlu0 %1544
        %1546 = vrot.lane.b32.xlu0 %v219, 24
        %v1547 = vpop.permute.xlu0 %1546
        %1548 = vrot.lane.b32.xlu0 %v221, 24
        %v1549 = vpop.permute.xlu0 %1548
        %1550 = vrot.lane.b32.xlu0 %v222, 24
        %v1551 = vpop.permute.xlu0 %1550
        %vm1584 = vcmask 224448
        %1585 = vst.msk [vmem:[#allocation2] sm:$0xf] %vm1584, %v1489
        %1586 = vst.msk [vmem:[#allocation2 + $0x4] sm:$0xf] %vm1584, %v1491
        %1587 = vst.msk [vmem:[#allocation2 + $0x8] sm:$0xf] %vm1584, %v1493
        %1588 = vst.msk [vmem:[#allocation2 + $0xc] sm:$0xf] %vm1584, %v1495
        %1589 = vst.msk [vmem:[#allocation2 + $0x10] sm:$0xf] %vm1584, %v1497
        %1590 = vst.msk [vmem:[#allocation2 + $0x14] sm:$0xf] %vm1584, %v1499
        %1591 = vst.msk [vmem:[#allocation2 + $0x18] sm:$0xf] %vm1584, %v1501
        %1592 = vst.msk [vmem:[#allocation2 + $0x1c] sm:$0xf] %vm1584, %v1503
        %1593 = vst.msk [vmem:[#allocation2 + $0x20] sm:$0xf] %vm1584, %v1505
        %1594 = vst.msk [vmem:[#allocation2 + $0x24] sm:$0xf] %vm1584, %v1507
        %1595 = vst.msk [vmem:[#allocation2 + $0x28] sm:$0xf] %vm1584, %v1509
        %1596 = vst.msk [vmem:[#allocation2 + $0x2c] sm:$0xf] %vm1584, %v1511
        %1597 = vst.msk [vmem:[#allocation2 + $0x30] sm:$0xf] %vm1584, %v1513
        %1598 = vst.msk [vmem:[#allocation2 + $0x34] sm:$0xf] %vm1584, %v1515
        %1599 = vst.msk [vmem:[#allocation2 + $0x38] sm:$0xf] %vm1584, %v1517
        %1600 = vst.msk [vmem:[#allocation2 + $0x3c] sm:$0xf] %vm1584, %v1519
        %1601 = vst.msk [vmem:[#allocation2 + $0x40] sm:$0xf] %vm1584, %v1521
        %1602 = vst.msk [vmem:[#allocation2 + $0x44] sm:$0xf] %vm1584, %v1523
        %1603 = vst.msk [vmem:[#allocation2 + $0x48] sm:$0xf] %vm1584, %v1525
        %1604 = vst.msk [vmem:[#allocation2 + $0x4c] sm:$0xf] %vm1584, %v1527
        %1605 = vst.msk [vmem:[#allocation2 + $0x50] sm:$0xf] %vm1584, %v1529
        %1606 = vst.msk [vmem:[#allocation2 + $0x54] sm:$0xf] %vm1584, %v1531
        %1607 = vst.msk [vmem:[#allocation2 + $0x58] sm:$0xf] %vm1584, %v1533
        %1608 = vst.msk [vmem:[#allocation2 + $0x5c] sm:$0xf] %vm1584, %v1535
        %1609 = vst.msk [vmem:[#allocation2 + $0x60] sm:$0xf] %vm1584, %v1537
        %1610 = vst.msk [vmem:[#allocation2 + $0x64] sm:$0xf] %vm1584, %v1539
        %1611 = vst.msk [vmem:[#allocation2 + $0x68] sm:$0xf] %vm1584, %v1541
        %1612 = vst.msk [vmem:[#allocation2 + $0x6c] sm:$0xf] %vm1584, %v1543
        %1613 = vst.msk [vmem:[#allocation2 + $0x70] sm:$0xf] %vm1584, %v1545
        %1614 = vst.msk [vmem:[#allocation2 + $0x74] sm:$0xf] %vm1584, %v1547
        %1615 = vst.msk [vmem:[#allocation2 + $0x78] sm:$0xf] %vm1584, %v1549
        %1616 = vst.msk [vmem:[#allocation2 + $0x7c] sm:$0xf] %vm1584, %v1551
        %v1618 = vshrl.u32 %v221, 16
        %v1620 = vrot.slane %v1618, 4
        %v1621 = vshll.u32 %v221, 16
        %v1623 = vrot.slane %v1621, 5
        %v1624 = vor.u32 %v1620, %v1623
        %v1625 = vrot.slane %v1624, 4
        %v1627 = vshll.u32 %v222, 16
        %v1629 = vrot.slane %v1627, 5
        %v1630 = vsel %vm259, %v1625, %v1629
        %v1631 = vshrl.u32 %v222, 16
        %v1633 = vrot.slane %v1631, 4
        %v1634 = vor.u32 %v1633, %v1629
        %v1635 = vrot.slane %v1634, 4
        %v1637 = vshll.u32 %v223, 16
        %v1639 = vrot.slane %v1637, 5
        %v1640 = vsel %vm259, %v1635, %v1639
        %1641 = vrot.lane.b32.xlu0 %v321, 28
        %v1642 = vpop.permute.xlu0 %1641
        %1643 = vrot.lane.b32.xlu0 %v331, 28
        %v1644 = vpop.permute.xlu0 %1643
        %1645 = vrot.lane.b32.xlu0 %v345, 28
        %v1646 = vpop.permute.xlu0 %1645
        %1647 = vrot.lane.b32.xlu0 %v355, 28
        %v1648 = vpop.permute.xlu0 %1647
        %1649 = vrot.lane.b32.xlu0 %v369, 28
        %v1650 = vpop.permute.xlu0 %1649
        %1651 = vrot.lane.b32.xlu0 %v379, 28
        %v1652 = vpop.permute.xlu0 %1651
        %1653 = vrot.lane.b32.xlu0 %v393, 28
        %v1654 = vpop.permute.xlu0 %1653
        %1655 = vrot.lane.b32.xlu0 %v403, 28
        %v1656 = vpop.permute.xlu0 %1655
        %1657 = vrot.lane.b32.xlu0 %v417, 28
        %v1658 = vpop.permute.xlu0 %1657
        %1659 = vrot.lane.b32.xlu0 %v427, 28
        %v1660 = vpop.permute.xlu0 %1659
        %1661 = vrot.lane.b32.xlu0 %v441, 28
        %v1662 = vpop.permute.xlu0 %1661
        %1663 = vrot.lane.b32.xlu0 %v451, 28
        %v1664 = vpop.permute.xlu0 %1663
        %1665 = vrot.lane.b32.xlu0 %v465, 28
        %v1666 = vpop.permute.xlu0 %1665
        %1667 = vrot.lane.b32.xlu0 %v475, 28
        %v1668 = vpop.permute.xlu0 %1667
        %1669 = vrot.lane.b32.xlu0 %v489, 28
        %v1670 = vpop.permute.xlu0 %1669
        %1671 = vrot.lane.b32.xlu0 %v499, 28
        %v1672 = vpop.permute.xlu0 %1671
        %1673 = vrot.lane.b32.xlu0 %v513, 28
        %v1674 = vpop.permute.xlu0 %1673
        %1675 = vrot.lane.b32.xlu0 %v523, 28
        %v1676 = vpop.permute.xlu0 %1675
        %1677 = vrot.lane.b32.xlu0 %v537, 28
        %v1678 = vpop.permute.xlu0 %1677
        %1679 = vrot.lane.b32.xlu0 %v547, 28
        %v1680 = vpop.permute.xlu0 %1679
        %1681 = vrot.lane.b32.xlu0 %v561, 28
        %v1682 = vpop.permute.xlu0 %1681
        %1683 = vrot.lane.b32.xlu0 %v571, 28
        %v1684 = vpop.permute.xlu0 %1683
        %1685 = vrot.lane.b32.xlu0 %v585, 28
        %v1686 = vpop.permute.xlu0 %1685
        %1687 = vrot.lane.b32.xlu0 %v595, 28
        %v1688 = vpop.permute.xlu0 %1687
        %1689 = vrot.lane.b32.xlu0 %v609, 28
        %v1690 = vpop.permute.xlu0 %1689
        %1691 = vrot.lane.b32.xlu0 %v619, 28
        %v1692 = vpop.permute.xlu0 %1691
        %1693 = vrot.lane.b32.xlu0 %v633, 28
        %v1694 = vpop.permute.xlu0 %1693
        %1695 = vrot.lane.b32.xlu0 %v643, 28
        %v1696 = vpop.permute.xlu0 %1695
        %1697 = vrot.lane.b32.xlu0 %v1209, 28
        %v1698 = vpop.permute.xlu0 %1697
        %1699 = vrot.lane.b32.xlu0 %v1219, 28
        %v1700 = vpop.permute.xlu0 %1699
        %1701 = vrot.lane.b32.xlu0 %v1630, 28
        %v1702 = vpop.permute.xlu0 %1701
        %1703 = vrot.lane.b32.xlu0 %v1640, 28
        %v1704 = vpop.permute.xlu0 %1703
        %vm1737 = vcmask 257248
        %1738 = vst.msk [vmem:[#allocation2] sm:$0xf] %vm1737, %v1642
        %1739 = vst.msk [vmem:[#allocation2 + $0x4] sm:$0xf] %vm1737, %v1644
        %1740 = vst.msk [vmem:[#allocation2 + $0x8] sm:$0xf] %vm1737, %v1646
        %1741 = vst.msk [vmem:[#allocation2 + $0xc] sm:$0xf] %vm1737, %v1648
        %1742 = vst.msk [vmem:[#allocation2 + $0x10] sm:$0xf] %vm1737, %v1650
        %1743 = vst.msk [vmem:[#allocation2 + $0x14] sm:$0xf] %vm1737, %v1652
        %1744 = vst.msk [vmem:[#allocation2 + $0x18] sm:$0xf] %vm1737, %v1654
        %1745 = vst.msk [vmem:[#allocation2 + $0x1c] sm:$0xf] %vm1737, %v1656
        %1746 = vst.msk [vmem:[#allocation2 + $0x20] sm:$0xf] %vm1737, %v1658
        %1747 = vst.msk [vmem:[#allocation2 + $0x24] sm:$0xf] %vm1737, %v1660
        %1748 = vst.msk [vmem:[#allocation2 + $0x28] sm:$0xf] %vm1737, %v1662
        %1749 = vst.msk [vmem:[#allocation2 + $0x2c] sm:$0xf] %vm1737, %v1664
        %1750 = vst.msk [vmem:[#allocation2 + $0x30] sm:$0xf] %vm1737, %v1666
        %1751 = vst.msk [vmem:[#allocation2 + $0x34] sm:$0xf] %vm1737, %v1668
        %1752 = vst.msk [vmem:[#allocation2 + $0x38] sm:$0xf] %vm1737, %v1670
        %1753 = vst.msk [vmem:[#allocation2 + $0x3c] sm:$0xf] %vm1737, %v1672
        %1754 = vst.msk [vmem:[#allocation2 + $0x40] sm:$0xf] %vm1737, %v1674
        %1755 = vst.msk [vmem:[#allocation2 + $0x44] sm:$0xf] %vm1737, %v1676
        %1756 = vst.msk [vmem:[#allocation2 + $0x48] sm:$0xf] %vm1737, %v1678
        %1757 = vst.msk [vmem:[#allocation2 + $0x4c] sm:$0xf] %vm1737, %v1680
        %1758 = vst.msk [vmem:[#allocation2 + $0x50] sm:$0xf] %vm1737, %v1682
        %1759 = vst.msk [vmem:[#allocation2 + $0x54] sm:$0xf] %vm1737, %v1684
        %1760 = vst.msk [vmem:[#allocation2 + $0x58] sm:$0xf] %vm1737, %v1686
        %1761 = vst.msk [vmem:[#allocation2 + $0x5c] sm:$0xf] %vm1737, %v1688
        %1762 = vst.msk [vmem:[#allocation2 + $0x60] sm:$0xf] %vm1737, %v1690
        %1763 = vst.msk [vmem:[#allocation2 + $0x64] sm:$0xf] %vm1737, %v1692
        %1764 = vst.msk [vmem:[#allocation2 + $0x68] sm:$0xf] %vm1737, %v1694
        %1765 = vst.msk [vmem:[#allocation2 + $0x6c] sm:$0xf] %vm1737, %v1696
        %1766 = vst.msk [vmem:[#allocation2 + $0x70] sm:$0xf] %vm1737, %v1698
        %1767 = vst.msk [vmem:[#allocation2 + $0x74] sm:$0xf] %vm1737, %v1700
        %1768 = vst.msk [vmem:[#allocation2 + $0x78] sm:$0xf] %vm1737, %v1702
        %1769 = vst.msk [vmem:[#allocation2 + $0x7c] sm:$0xf] %vm1737, %v1704
        %v1771 = vrot.slane %v221, 5
        %v1772 = vrot.slane %v1771, 4
        %v1773 = vrot.slane %v222, 5
        %v1774 = vsel %vm823, %v1772, %v1773
        %v1775 = vrot.slane %v1773, 4
        %v1776 = vrot.slane %v223, 5
        %v1777 = vsel %vm823, %v1775, %v1776
        %1778 = vrot.lane.b32.xlu0 %v841, 32
        %v1779 = vpop.permute.xlu0 %1778
        %1780 = vrot.lane.b32.xlu0 %v844, 32
        %v1781 = vpop.permute.xlu0 %1780
        %1782 = vrot.lane.b32.xlu0 %v848, 32
        %v1783 = vpop.permute.xlu0 %1782
        %1784 = vrot.lane.b32.xlu0 %v851, 32
        %v1785 = vpop.permute.xlu0 %1784
        %1786 = vrot.lane.b32.xlu0 %v855, 32
        %v1787 = vpop.permute.xlu0 %1786
        %1788 = vrot.lane.b32.xlu0 %v858, 32
        %v1789 = vpop.permute.xlu0 %1788
        %1790 = vrot.lane.b32.xlu0 %v862, 32
        %v1791 = vpop.permute.xlu0 %1790
        %1792 = vrot.lane.b32.xlu0 %v865, 32
        %v1793 = vpop.permute.xlu0 %1792
        %1794 = vrot.lane.b32.xlu0 %v869, 32
        %v1795 = vpop.permute.xlu0 %1794
        %1796 = vrot.lane.b32.xlu0 %v872, 32
        %v1797 = vpop.permute.xlu0 %1796
        %1798 = vrot.lane.b32.xlu0 %v876, 32
        %v1799 = vpop.permute.xlu0 %1798
        %1800 = vrot.lane.b32.xlu0 %v879, 32
        %v1801 = vpop.permute.xlu0 %1800
        %1802 = vrot.lane.b32.xlu0 %v883, 32
        %v1803 = vpop.permute.xlu0 %1802
        %1804 = vrot.lane.b32.xlu0 %v886, 32
        %v1805 = vpop.permute.xlu0 %1804
        %1806 = vrot.lane.b32.xlu0 %v890, 32
        %v1807 = vpop.permute.xlu0 %1806
        %1808 = vrot.lane.b32.xlu0 %v893, 32
        %v1809 = vpop.permute.xlu0 %1808
        %1810 = vrot.lane.b32.xlu0 %v897, 32
        %v1811 = vpop.permute.xlu0 %1810
        %1812 = vrot.lane.b32.xlu0 %v900, 32
        %v1813 = vpop.permute.xlu0 %1812
        %1814 = vrot.lane.b32.xlu0 %v904, 32
        %v1815 = vpop.permute.xlu0 %1814
        %1816 = vrot.lane.b32.xlu0 %v907, 32
        %v1817 = vpop.permute.xlu0 %1816
        %1818 = vrot.lane.b32.xlu0 %v911, 32
        %v1819 = vpop.permute.xlu0 %1818
        %1820 = vrot.lane.b32.xlu0 %v914, 32
        %v1821 = vpop.permute.xlu0 %1820
        %1822 = vrot.lane.b32.xlu0 %v918, 32
        %v1823 = vpop.permute.xlu0 %1822
        %1824 = vrot.lane.b32.xlu0 %v921, 32
        %v1825 = vpop.permute.xlu0 %1824
        %1826 = vrot.lane.b32.xlu0 %v925, 32
        %v1827 = vpop.permute.xlu0 %1826
        %1828 = vrot.lane.b32.xlu0 %v928, 32
        %v1829 = vpop.permute.xlu0 %1828
        %1830 = vrot.lane.b32.xlu0 %v932, 32
        %v1831 = vpop.permute.xlu0 %1830
        %1832 = vrot.lane.b32.xlu0 %v935, 32
        %v1833 = vpop.permute.xlu0 %1832
        %1834 = vrot.lane.b32.xlu0 %v1353, 32
        %v1835 = vpop.permute.xlu0 %1834
        %1836 = vrot.lane.b32.xlu0 %v1356, 32
        %v1837 = vpop.permute.xlu0 %1836
        %1838 = vrot.lane.b32.xlu0 %v1774, 32
        %v1839 = vpop.permute.xlu0 %1838
        %1840 = vrot.lane.b32.xlu0 %v1777, 32
        %v1841 = vpop.permute.xlu0 %1840
        %vm1874 = vcmask 290048
        %1875 = vst.msk [vmem:[#allocation2] sm:$0xf] %vm1874, %v1779
        %1876 = vst.msk [vmem:[#allocation2 + $0x4] sm:$0xf] %vm1874, %v1781
        %1877 = vst.msk [vmem:[#allocation2 + $0x8] sm:$0xf] %vm1874, %v1783
        %1878 = vst.msk [vmem:[#allocation2 + $0xc] sm:$0xf] %vm1874, %v1785
        %1879 = vst.msk [vmem:[#allocation2 + $0x10] sm:$0xf] %vm1874, %v1787
        %1880 = vst.msk [vmem:[#allocation2 + $0x14] sm:$0xf] %vm1874, %v1789
        %1881 = vst.msk [vmem:[#allocation2 + $0x18] sm:$0xf] %vm1874, %v1791
        %1882 = vst.msk [vmem:[#allocation2 + $0x1c] sm:$0xf] %vm1874, %v1793
        %1883 = vst.msk [vmem:[#allocation2 + $0x20] sm:$0xf] %vm1874, %v1795
        %1884 = vst.msk [vmem:[#allocation2 + $0x24] sm:$0xf] %vm1874, %v1797
        %1885 = vst.msk [vmem:[#allocation2 + $0x28] sm:$0xf] %vm1874, %v1799
        %1886 = vst.msk [vmem:[#allocation2 + $0x2c] sm:$0xf] %vm1874, %v1801
        %1887 = vst.msk [vmem:[#allocation2 + $0x30] sm:$0xf] %vm1874, %v1803
        %1888 = vst.msk [vmem:[#allocation2 + $0x34] sm:$0xf] %vm1874, %v1805
        %1889 = vst.msk [vmem:[#allocation2 + $0x38] sm:$0xf] %vm1874, %v1807
        %1890 = vst.msk [vmem:[#allocation2 + $0x3c] sm:$0xf] %vm1874, %v1809
        %1891 = vst.msk [vmem:[#allocation2 + $0x40] sm:$0xf] %vm1874, %v1811
        %1892 = vst.msk [vmem:[#allocation2 + $0x44] sm:$0xf] %vm1874, %v1813
        %1893 = vst.msk [vmem:[#allocation2 + $0x48] sm:$0xf] %vm1874, %v1815
        %1894 = vst.msk [vmem:[#allocation2 + $0x4c] sm:$0xf] %vm1874, %v1817
        %1895 = vst.msk [vmem:[#allocation2 + $0x50] sm:$0xf] %vm1874, %v1819
        %1896 = vst.msk [vmem:[#allocation2 + $0x54] sm:$0xf] %vm1874, %v1821
        %1897 = vst.msk [vmem:[#allocation2 + $0x58] sm:$0xf] %vm1874, %v1823
        %1898 = vst.msk [vmem:[#allocation2 + $0x5c] sm:$0xf] %vm1874, %v1825
        %1899 = vst.msk [vmem:[#allocation2 + $0x60] sm:$0xf] %vm1874, %v1827
        %1900 = vst.msk [vmem:[#allocation2 + $0x64] sm:$0xf] %vm1874, %v1829
        %1901 = vst.msk [vmem:[#allocation2 + $0x68] sm:$0xf] %vm1874, %v1831
        %1902 = vst.msk [vmem:[#allocation2 + $0x6c] sm:$0xf] %vm1874, %v1833
        %1903 = vst.msk [vmem:[#allocation2 + $0x70] sm:$0xf] %vm1874, %v1835
        %1904 = vst.msk [vmem:[#allocation2 + $0x74] sm:$0xf] %vm1874, %v1837
        %1905 = vst.msk [vmem:[#allocation2 + $0x78] sm:$0xf] %vm1874, %v1839
        %1906 = vst.msk [vmem:[#allocation2 + $0x7c] sm:$0xf] %vm1874, %v1841
        %v1907 = vld [vmem:[#allocation2] sm:$0xf]
        %v1908 = vld [vmem:[#allocation2 + $0x4] sm:$0xf]
        %v1909 = vld [vmem:[#allocation2 + $0x8] sm:$0xf]
        %v1910 = vld [vmem:[#allocation2 + $0xc] sm:$0xf]
        %v1911 = vld [vmem:[#allocation2 + $0x10] sm:$0xf]
        %v1912 = vld [vmem:[#allocation2 + $0x14] sm:$0xf]
        %v1913 = vld [vmem:[#allocation2 + $0x18] sm:$0xf]
        %v1914 = vld [vmem:[#allocation2 + $0x1c] sm:$0xf]
        %v1915 = vld [vmem:[#allocation2 + $0x20] sm:$0xf]
        %v1916 = vld [vmem:[#allocation2 + $0x24] sm:$0xf]
        %v1917 = vld [vmem:[#allocation2 + $0x28] sm:$0xf]
        %v1918 = vld [vmem:[#allocation2 + $0x2c] sm:$0xf]
        %v1919 = vld [vmem:[#allocation2 + $0x30] sm:$0xf]
        %v1920 = vld [vmem:[#allocation2 + $0x34] sm:$0xf]
        %v1921 = vld [vmem:[#allocation2 + $0x38] sm:$0xf]
        %v1922 = vld [vmem:[#allocation2 + $0x3c] sm:$0xf]
        %v1923 = vld [vmem:[#allocation2 + $0x40] sm:$0xf]
        %v1924 = vld [vmem:[#allocation2 + $0x44] sm:$0xf]
        %v1925 = vld [vmem:[#allocation2 + $0x48] sm:$0xf]
        %v1926 = vld [vmem:[#allocation2 + $0x4c] sm:$0xf]
        %v1927 = vld [vmem:[#allocation2 + $0x50] sm:$0xf]
        %v1928 = vld [vmem:[#allocation2 + $0x54] sm:$0xf]
        %v1929 = vld [vmem:[#allocation2 + $0x58] sm:$0xf]
        %v1930 = vld [vmem:[#allocation2 + $0x5c] sm:$0xf]
        %v1931 = vld [vmem:[#allocation2 + $0x60] sm:$0xf]
        %v1932 = vld [vmem:[#allocation2 + $0x64] sm:$0xf]
        %v1933 = vld [vmem:[#allocation2 + $0x68] sm:$0xf]
        %v1934 = vld [vmem:[#allocation2 + $0x6c] sm:$0xf]
        %v1935 = vld [vmem:[#allocation2 + $0x70] sm:$0xf]
        %v1936 = vld [vmem:[#allocation2 + $0x74] sm:$0xf]
        %v1937 = vld [vmem:[#allocation2 + $0x78] sm:$0xf]
        %v1938 = vld [vmem:[#allocation2 + $0x7c] sm:$0xf]
        %v1939 = vld [vmem:[%s1] sm:$0xf]
        %v1940 = vld [vmem:[%s1 + $0x4] sm:$0xf]
        %v1941 = vld [vmem:[%s1 + $0x8] sm:$0xf]
        %v1942 = vld [vmem:[%s1 + $0xc] sm:$0xf]
        %v1943 = vld [vmem:[%s1 + $0x10] sm:$0x3]
        %v1944 = vld [vmem:[%s2] sm:$0x1]
        %v1946 = vlaneseq
        %v1947 = vshrl.u32 %v1946, 7
        %v1948 = vsub.s32 0, %v1947
        %v1949 = vrot.slane %v1944, %v1948
        %v1983 = vunpack.c.l.b16 %v1907
        %v1984 = vunpack.c.l.b16 %v1908
        %v1985 = vunpack.c.l.b16 %v1909
        %v1986 = vunpack.c.l.b16 %v1910
        %v1987 = vunpack.c.l.b16 %v1911
        %v1988 = vunpack.c.l.b16 %v1912
        %v1989 = vunpack.c.l.b16 %v1913
        %v1990 = vunpack.c.l.b16 %v1914
        %v1991 = vunpack.c.l.b16 %v1915
        %v1992 = vunpack.c.l.b16 %v1916
        %v1993 = vunpack.c.l.b16 %v1917
        %v1994 = vunpack.c.l.b16 %v1918
        %v1995 = vunpack.c.l.b16 %v1919
        %v1996 = vunpack.c.l.b16 %v1920
        %v1997 = vunpack.c.l.b16 %v1921
        %v1998 = vunpack.c.l.b16 %v1922
        %v1999 = vunpack.c.l.b16 %v1923
        %v2000 = vunpack.c.l.b16 %v1924
        %v2001 = vunpack.c.l.b16 %v1925
        %v2002 = vunpack.c.l.b16 %v1926
        %v2003 = vunpack.c.l.b16 %v1927
        %v2004 = vunpack.c.l.b16 %v1928
        %v2005 = vunpack.c.l.b16 %v1929
        %v2006 = vunpack.c.l.b16 %v1930
        %v2007 = vunpack.c.l.b16 %v1931
        %v2008 = vunpack.c.l.b16 %v1932
        %v2009 = vunpack.c.l.b16 %v1933
        %v2010 = vunpack.c.l.b16 %v1934
        %v2011 = vunpack.c.l.b16 %v1935
        %v2012 = vunpack.c.l.b16 %v1936
        %v2013 = vunpack.c.l.b16 %v1937
        %v2014 = vunpack.c.l.b16 %v1938
        %v2015 = vpack.c.b16 %v1984, %v1983
        %v2016 = vpack.c.b16 %v1986, %v1985
        %v2017 = vpack.c.b16 %v1988, %v1987
        %v2018 = vpack.c.b16 %v1990, %v1989
        %v2019 = vpack.c.b16 %v1992, %v1991
        %v2020 = vpack.c.b16 %v1994, %v1993
        %v2021 = vpack.c.b16 %v1996, %v1995
        %v2022 = vpack.c.b16 %v1998, %v1997
        %v2023 = vpack.c.b16 %v2000, %v1999
        %v2024 = vpack.c.b16 %v2002, %v2001
        %v2025 = vpack.c.b16 %v2004, %v2003
        %v2026 = vpack.c.b16 %v2006, %v2005
        %v2027 = vpack.c.b16 %v2008, %v2007
        %v2028 = vpack.c.b16 %v2010, %v2009
        %v2029 = vpack.c.b16 %v2012, %v2011
        %v2030 = vpack.c.b16 %v2014, %v2013
        %v2036 = vunpack.c.l.b16 %v1939
        %v2037 = vunpack.c.l.b16 %v1940
        %v2038 = vunpack.c.l.b16 %v1941
        %v2039 = vunpack.c.l.b16 %v1942
        %v2040 = vunpack.c.l.b16 %v1943
        %v2041 = vpack.c.b16 %v2037, %v2036
        %v2042 = vpack.c.b16 %v2039, %v2038
        %v2043 = vpack.c.b16 %v2040, %v2040
        %vm2046 = vcmask 293888
        %v2048 = vsel %vm2046, %v2015, 0
        %v2051 = vsel %vm2046, %v2016, 0
        %v2054 = vsel %vm2046, %v2017, 0
        %v2057 = vsel %vm2046, %v2018, 0
        %v2060 = vsel %vm2046, %v2019, 0
        %v2063 = vsel %vm2046, %v2020, 0
        %v2066 = vsel %vm2046, %v2021, 0
        %v2069 = vsel %vm2046, %v2022, 0
        %v2072 = vsel %vm2046, %v2023, 0
        %v2075 = vsel %vm2046, %v2024, 0
        %v2078 = vsel %vm2046, %v2025, 0
        %v2081 = vsel %vm2046, %v2026, 0
        %v2084 = vsel %vm2046, %v2027, 0
        %v2087 = vsel %vm2046, %v2028, 0
        %v2090 = vsel %vm2046, %v2029, 0
        %v2093 = vsel %vm2046, %v2030, 0
        %vm2095 = vcmask 1041408
        %v2097 = vsel %vm2095, %v2043, 0
        %2099 = vmatprep.subr.bf16.mxu0 0
        %2100 = vmatpush1.bf16.msra.mxu0 0
        %2101 = vmatprep.subr.bf16.mxu0 0
        %2102 = vmatpush1.bf16.msra.mxu0 0
        %2103 = vmatprep.subr.bf16.mxu0 0
        %2104 = vmatpush1.bf16.msra.mxu0 0
        %2105 = vmatprep.subr.bf16.mxu0 0
        %2106 = vmatpush1.bf16.msra.mxu0 0
        %2107 = vmatprep.subr.bf16.mxu0 0
        %2108 = vmatpush1.bf16.msra.mxu0 0
        %2109 = vmatprep.subr.bf16.mxu0 0
        %2110 = vmatpush1.bf16.msra.mxu0 %v2097
        %2111 = vmatprep.subr.bf16.mxu0 0
        %2112 = vmatpush1.bf16.msra.mxu0 %v2042
        %2113 = vmatprep.subr.bf16.mxu0 0
        %2114 = vmatpush1.bf16.msra.mxu0 %v2041
        %2115 = vmatprep.subr.bf16.mxu0 0
        %2116 = vmatpush2.bf16.msra.mxu0 0
        %2117 = vmatprep.subr.bf16.mxu0 0
        %2118 = vmatpush2.bf16.msra.mxu0 0
        %2119 = vmatprep.subr.bf16.mxu0 0
        %2120 = vmatpush2.bf16.msra.mxu0 0
        %2121 = vmatprep.subr.bf16.mxu0 0
        %2122 = vmatpush2.bf16.msra.mxu0 0
        %2123 = vmatprep.subr.bf16.mxu0 0
        %2124 = vmatpush2.bf16.msra.mxu0 0
        %2125 = vmatprep.subr.bf16.mxu0 0
        %2126 = vmatpush2.bf16.msra.mxu0 0
        %2127 = vmatprep.subr.bf16.mxu0 0
        %2128 = vmatpush2.bf16.msra.mxu0 0
        %2129 = vmatprep.subr.bf16.mxu0 0
        %2130 = vmatpush2.bf16.msra.mxu0 0
        %2131 = vmatprep.mubr.bf16.mxu0 0
        %2132 = vmatmul.mubr.bf16.gmra.mxu0 %v2048
        %v2133 = vpop.f32.mrf.mxu0
        %v2134 = vadd.f32 %v1949, %v2133
        %v2135 = vpop.f32.mrf.mxu0
        %v2136 = vpop.f32.mrf.mxu0
        %v2137 = vadd.f32 %v1949, %v2136
        %v2138 = vpop.f32.mrf.mxu0
        %2139 = vmatprep.mubr.bf16.mxu0 0
        %2140 = vmatmul.mubr.bf16.gmra.mxu0 %v2051
        %v2141 = vpop.f32.mrf.mxu0
        %v2142 = vadd.f32 %v1949, %v2141
        %v2143 = vpop.f32.mrf.mxu0
        %v2144 = vpop.f32.mrf.mxu0
        %v2145 = vadd.f32 %v1949, %v2144
        %v2146 = vpop.f32.mrf.mxu0
        %2147 = vmatprep.mubr.bf16.mxu0 0
        %2148 = vmatmul.mubr.bf16.gmra.mxu0 %v2054
        %v2149 = vpop.f32.mrf.mxu0
        %v2150 = vadd.f32 %v1949, %v2149
        %v2151 = vpop.f32.mrf.mxu0
        %v2152 = vpop.f32.mrf.mxu0
        %v2153 = vadd.f32 %v1949, %v2152
        %v2154 = vpop.f32.mrf.mxu0
        %2155 = vmatprep.mubr.bf16.mxu0 0
        %2156 = vmatmul.mubr.bf16.gmra.mxu0 %v2057
        %v2157 = vpop.f32.mrf.mxu0
        %v2158 = vadd.f32 %v1949, %v2157
        %v2159 = vpop.f32.mrf.mxu0
        %v2160 = vpop.f32.mrf.mxu0
        %v2161 = vadd.f32 %v1949, %v2160
        %v2162 = vpop.f32.mrf.mxu0
        %2163 = vmatprep.mubr.bf16.mxu0 0
        %2164 = vmatmul.mubr.bf16.gmra.mxu0 %v2060
        %v2165 = vpop.f32.mrf.mxu0
        %v2166 = vadd.f32 %v1949, %v2165
        %v2167 = vpop.f32.mrf.mxu0
        %v2168 = vpop.f32.mrf.mxu0
        %v2169 = vadd.f32 %v1949, %v2168
        %v2170 = vpop.f32.mrf.mxu0
        %2171 = vmatprep.mubr.bf16.mxu0 0
        %2172 = vmatmul.mubr.bf16.gmra.mxu0 %v2063
        %v2173 = vpop.f32.mrf.mxu0
        %v2174 = vadd.f32 %v1949, %v2173
        %v2175 = vpop.f32.mrf.mxu0
        %v2176 = vpop.f32.mrf.mxu0
        %v2177 = vadd.f32 %v1949, %v2176
        %v2178 = vpop.f32.mrf.mxu0
        %2179 = vmatprep.mubr.bf16.mxu0 0
        %2180 = vmatmul.mubr.bf16.gmra.mxu0 %v2066
        %v2181 = vpop.f32.mrf.mxu0
        %v2182 = vadd.f32 %v1949, %v2181
        %v2183 = vpop.f32.mrf.mxu0
        %v2184 = vpop.f32.mrf.mxu0
        %v2185 = vadd.f32 %v1949, %v2184
        %v2186 = vpop.f32.mrf.mxu0
        %2187 = vmatprep.mubr.bf16.mxu0 0
        %2188 = vmatmul.mubr.bf16.gmra.mxu0 %v2069
        %v2189 = vpop.f32.mrf.mxu0
        %v2190 = vadd.f32 %v1949, %v2189
        %v2191 = vpop.f32.mrf.mxu0
        %v2192 = vpop.f32.mrf.mxu0
        %v2193 = vadd.f32 %v1949, %v2192
        %v2194 = vpop.f32.mrf.mxu0
        %2195 = vmatprep.mubr.bf16.mxu0 0
        %2196 = vmatmul.mubr.bf16.gmra.mxu0 %v2072
        %v2197 = vpop.f32.mrf.mxu0
        %v2198 = vadd.f32 %v1949, %v2197
        %v2199 = vpop.f32.mrf.mxu0
        %v2200 = vpop.f32.mrf.mxu0
        %v2201 = vadd.f32 %v1949, %v2200
        %v2202 = vpop.f32.mrf.mxu0
        %2203 = vmatprep.mubr.bf16.mxu0 0
        %2204 = vmatmul.mubr.bf16.gmra.mxu0 %v2075
        %v2205 = vpop.f32.mrf.mxu0
        %v2206 = vadd.f32 %v1949, %v2205
        %v2207 = vpop.f32.mrf.mxu0
        %v2208 = vpop.f32.mrf.mxu0
        %v2209 = vadd.f32 %v1949, %v2208
        %v2210 = vpop.f32.mrf.mxu0
        %2211 = vmatprep.mubr.bf16.mxu0 0
        %2212 = vmatmul.mubr.bf16.gmra.mxu0 %v2078
        %v2213 = vpop.f32.mrf.mxu0
        %v2214 = vadd.f32 %v1949, %v2213
        %v2215 = vpop.f32.mrf.mxu0
        %v2216 = vpop.f32.mrf.mxu0
        %v2217 = vadd.f32 %v1949, %v2216
        %v2218 = vpop.f32.mrf.mxu0
        %2219 = vmatprep.mubr.bf16.mxu0 0
        %2220 = vmatmul.mubr.bf16.gmra.mxu0 %v2081
        %v2221 = vpop.f32.mrf.mxu0
        %v2222 = vadd.f32 %v1949, %v2221
        %v2223 = vpop.f32.mrf.mxu0
        %v2224 = vpop.f32.mrf.mxu0
        %v2225 = vadd.f32 %v1949, %v2224
        %v2226 = vpop.f32.mrf.mxu0
        %2227 = vmatprep.mubr.bf16.mxu0 0
        %2228 = vmatmul.mubr.bf16.gmra.mxu0 %v2084
        %v2229 = vpop.f32.mrf.mxu0
        %v2230 = vadd.f32 %v1949, %v2229
        %v2231 = vpop.f32.mrf.mxu0
        %v2232 = vpop.f32.mrf.mxu0
        %v2233 = vadd.f32 %v1949, %v2232
        %v2234 = vpop.f32.mrf.mxu0
        %2235 = vmatprep.mubr.bf16.mxu0 0
        %2236 = vmatmul.mubr.bf16.gmra.mxu0 %v2087
        %v2237 = vpop.f32.mrf.mxu0
        %v2238 = vadd.f32 %v1949, %v2237
        %v2239 = vpop.f32.mrf.mxu0
        %v2240 = vpop.f32.mrf.mxu0
        %v2241 = vadd.f32 %v1949, %v2240
        %v2242 = vpop.f32.mrf.mxu0
        %2243 = vmatprep.mubr.bf16.mxu0 0
        %2244 = vmatmul.mubr.bf16.gmra.mxu0 %v2090
        %v2245 = vpop.f32.mrf.mxu0
        %v2246 = vadd.f32 %v1949, %v2245
        %v2247 = vpop.f32.mrf.mxu0
        %v2248 = vpop.f32.mrf.mxu0
        %v2249 = vadd.f32 %v1949, %v2248
        %v2250 = vpop.f32.mrf.mxu0
        %2251 = vmatprep.mubr.bf16.mxu0 0
        %2252 = vmatmul.mubr.bf16.gmra.mxu0 %v2093
        %v2253 = vpop.f32.mrf.mxu0
        %v2254 = vadd.f32 %v1949, %v2253
        %v2255 = vpop.f32.mrf.mxu0
        %v2256 = vpop.f32.mrf.mxu0
        %v2257 = vadd.f32 %v1949, %v2256
        %v2258 = vpop.f32.mrf.mxu0
        %2259 = vdwg.mxu0
        %v2260 = vmax.f32 %v2134, 0.0
        %v2261 = vmax.f32 %v2137, 0.0
        %v2262 = vmax.f32 %v2142, 0.0
        %v2263 = vmax.f32 %v2145, 0.0
        %v2264 = vmax.f32 %v2150, 0.0
        %v2265 = vmax.f32 %v2153, 0.0
        %v2266 = vmax.f32 %v2158, 0.0
        %v2267 = vmax.f32 %v2161, 0.0
        %v2268 = vmax.f32 %v2166, 0.0
        %v2269 = vmax.f32 %v2169, 0.0
        %v2270 = vmax.f32 %v2174, 0.0
        %v2271 = vmax.f32 %v2177, 0.0
        %v2272 = vmax.f32 %v2182, 0.0
        %v2273 = vmax.f32 %v2185, 0.0
        %v2274 = vmax.f32 %v2190, 0.0
        %v2275 = vmax.f32 %v2193, 0.0
        %v2276 = vmax.f32 %v2198, 0.0
        %v2277 = vmax.f32 %v2201, 0.0
        %v2278 = vmax.f32 %v2206, 0.0
        %v2279 = vmax.f32 %v2209, 0.0
        %v2280 = vmax.f32 %v2214, 0.0
        %v2281 = vmax.f32 %v2217, 0.0
        %v2282 = vmax.f32 %v2222, 0.0
        %v2283 = vmax.f32 %v2225, 0.0
        %v2284 = vmax.f32 %v2230, 0.0
        %v2285 = vmax.f32 %v2233, 0.0
        %v2286 = vmax.f32 %v2238, 0.0
        %v2287 = vmax.f32 %v2241, 0.0
        %v2288 = vmax.f32 %v2246, 0.0
        %v2289 = vmax.f32 %v2249, 0.0
        %v2290 = vmax.f32 %v2254, 0.0
        %v2291 = vmax.f32 %v2257, 0.0
        %v2292 = vpack.c.bf16 %v2261, %v2260
        %v2293 = vpack.c.bf16 %v2263, %v2262
        %v2294 = vpack.c.bf16 %v2265, %v2264
        %v2295 = vpack.c.bf16 %v2267, %v2266
        %v2296 = vpack.c.bf16 %v2269, %v2268
        %v2297 = vpack.c.bf16 %v2271, %v2270
        %v2298 = vpack.c.bf16 %v2273, %v2272
        %v2299 = vpack.c.bf16 %v2275, %v2274
        %v2300 = vpack.c.bf16 %v2277, %v2276
        %v2301 = vpack.c.bf16 %v2279, %v2278
        %v2302 = vpack.c.bf16 %v2281, %v2280
        %v2303 = vpack.c.bf16 %v2283, %v2282
        %v2304 = vpack.c.bf16 %v2285, %v2284
        %v2305 = vpack.c.bf16 %v2287, %v2286
        %v2306 = vpack.c.bf16 %v2289, %v2288
        %v2307 = vpack.c.bf16 %v2291, %v2290
        %v2324 = vunpack.c.l.b16 %v2292
        %v2325 = vunpack.c.h.b16 %v2292
        %v2326 = vunpack.c.l.b16 %v2293
        %v2327 = vunpack.c.h.b16 %v2293
        %v2328 = vunpack.c.l.b16 %v2294
        %v2329 = vunpack.c.h.b16 %v2294
        %v2330 = vunpack.c.l.b16 %v2295
        %v2331 = vunpack.c.h.b16 %v2295
        %v2332 = vunpack.c.l.b16 %v2296
        %v2333 = vunpack.c.h.b16 %v2296
        %v2334 = vunpack.c.l.b16 %v2297
        %v2335 = vunpack.c.h.b16 %v2297
        %v2336 = vunpack.c.l.b16 %v2298
        %v2337 = vunpack.c.h.b16 %v2298
        %v2338 = vunpack.c.l.b16 %v2299
        %v2339 = vunpack.c.h.b16 %v2299
        %v2340 = vunpack.c.l.b16 %v2300
        %v2341 = vunpack.c.h.b16 %v2300
        %v2342 = vunpack.c.l.b16 %v2301
        %v2343 = vunpack.c.h.b16 %v2301
        %v2344 = vunpack.c.l.b16 %v2302
        %v2345 = vunpack.c.h.b16 %v2302
        %v2346 = vunpack.c.l.b16 %v2303
        %v2347 = vunpack.c.h.b16 %v2303
        %v2348 = vunpack.c.l.b16 %v2304
        %v2349 = vunpack.c.h.b16 %v2304
        %v2350 = vunpack.c.l.b16 %v2305
        %v2351 = vunpack.c.h.b16 %v2305
        %v2352 = vunpack.c.l.b16 %v2306
        %v2353 = vunpack.c.h.b16 %v2306
        %v2354 = vunpack.c.l.b16 %v2307
        %v2355 = vunpack.c.h.b16 %v2307
        %v2356 = vpack.c.b16 %v2324, %v2324
        %v2357 = vpack.c.b16 %v2325, %v2325
        %v2358 = vpack.c.b16 %v2326, %v2326
        %v2359 = vpack.c.b16 %v2327, %v2327
        %v2360 = vpack.c.b16 %v2328, %v2328
        %v2361 = vpack.c.b16 %v2329, %v2329
        %v2362 = vpack.c.b16 %v2330, %v2330
        %v2363 = vpack.c.b16 %v2331, %v2331
        %v2364 = vpack.c.b16 %v2332, %v2332
        %v2365 = vpack.c.b16 %v2333, %v2333
        %v2366 = vpack.c.b16 %v2334, %v2334
        %v2367 = vpack.c.b16 %v2335, %v2335
        %v2368 = vpack.c.b16 %v2336, %v2336
        %v2369 = vpack.c.b16 %v2337, %v2337
        %v2370 = vpack.c.b16 %v2338, %v2338
        %v2371 = vpack.c.b16 %v2339, %v2339
        %v2372 = vpack.c.b16 %v2340, %v2340
        %v2373 = vpack.c.b16 %v2341, %v2341
        %v2374 = vpack.c.b16 %v2342, %v2342
        %v2375 = vpack.c.b16 %v2343, %v2343
        %v2376 = vpack.c.b16 %v2344, %v2344
        %v2377 = vpack.c.b16 %v2345, %v2345
        %v2378 = vpack.c.b16 %v2346, %v2346
        %v2379 = vpack.c.b16 %v2347, %v2347
        %v2380 = vpack.c.b16 %v2348, %v2348
        %v2381 = vpack.c.b16 %v2349, %v2349
        %v2382 = vpack.c.b16 %v2350, %v2350
        %v2383 = vpack.c.b16 %v2351, %v2351
        %v2384 = vpack.c.b16 %v2352, %v2352
        %v2385 = vpack.c.b16 %v2353, %v2353
        %v2386 = vpack.c.b16 %v2354, %v2354
        %v2387 = vpack.c.b16 %v2355, %v2355
        %2420 = vst [vmem:[%s163] sm:$0xf] %v2356
        %2421 = vst [vmem:[%s163 + $0x4] sm:$0xf] %v2357
        %2422 = vst [vmem:[%s163 + $0x8] sm:$0xf] %v2358
        %2423 = vst [vmem:[%s163 + $0xc] sm:$0xf] %v2359
        %2424 = vst [vmem:[%s163 + $0x10] sm:$0xf] %v2360
        %2425 = vst [vmem:[%s163 + $0x14] sm:$0xf] %v2361
        %2426 = vst [vmem:[%s163 + $0x18] sm:$0xf] %v2362
        %2427 = vst [vmem:[%s163 + $0x1c] sm:$0xf] %v2363
        %2428 = vst [vmem:[%s163 + $0x20] sm:$0xf] %v2364
        %2429 = vst [vmem:[%s163 + $0x24] sm:$0xf] %v2365
        %2430 = vst [vmem:[%s163 + $0x28] sm:$0xf] %v2366
        %2431 = vst [vmem:[%s163 + $0x2c] sm:$0xf] %v2367
        %2432 = vst [vmem:[%s163 + $0x30] sm:$0xf] %v2368
        %2433 = vst [vmem:[%s163 + $0x34] sm:$0xf] %v2369
        %2434 = vst [vmem:[%s163 + $0x38] sm:$0xf] %v2370
        %2435 = vst [vmem:[%s163 + $0x3c] sm:$0xf] %v2371
        %2436 = vst [vmem:[%s163 + $0x40] sm:$0xf] %v2372
        %2437 = vst [vmem:[%s163 + $0x44] sm:$0xf] %v2373
        %2438 = vst [vmem:[%s163 + $0x48] sm:$0xf] %v2374
        %2439 = vst [vmem:[%s163 + $0x4c] sm:$0xf] %v2375
        %2440 = vst [vmem:[%s163 + $0x50] sm:$0xf] %v2376
        %2441 = vst [vmem:[%s163 + $0x54] sm:$0xf] %v2377
        %2442 = vst [vmem:[%s163 + $0x58] sm:$0xf] %v2378
        %2443 = vst [vmem:[%s163 + $0x5c] sm:$0xf] %v2379
        %2444 = vst [vmem:[%s163 + $0x60] sm:$0xf] %v2380
        %2445 = vst [vmem:[%s163 + $0x64] sm:$0xf] %v2381
        %2446 = vst [vmem:[%s163 + $0x68] sm:$0xf] %v2382
        %2447 = vst [vmem:[%s163 + $0x6c] sm:$0xf] %v2383
        %2448 = vst [vmem:[%s163 + $0x70] sm:$0xf] %v2384
        %2449 = vst [vmem:[%s163 + $0x74] sm:$0xf] %v2385
        %2450 = vst [vmem:[%s163 + $0x78] sm:$0xf] %v2386
        %2451 = vst [vmem:[%s163 + $0x7c] sm:$0xf] %v2387
        %s2452 = sand.u32 %s93, 1
        %s2453 = scalar_lea.sflag [#allocation4], %s2452
        %s2454 = sand.u32 %s93, 1
        %s2455 = smul.addr %s2454, 128
        %s2456 = scalar_lea.vmem [#allocation3], %s2455
        // Predicated region
        $region33: #{tpu_custom_call.1} parent=31 // pred_check
          %p2457 = pneg %p103
        $region34: #{tpu_custom_call.1} parent=31 // pred_check_branch
          %2459 = sbr.rel (%p2457) target = $region36
        $region35: #{tpu_custom_call.1} parent=31 // pred_region
          %s2461 = ssub.s32 2048, 2048
          %2462 = vsyncadd %s2453, %s2461
          %s2463 = smul.addr %s17, 32
          %s2464 = smul.addr %s2463, 64
          %s2465 = scalar_lea.hbm %s3, %s2464
          %s2466 = sshll.u32 %s2456, 4
          %s2467 = int_to_ptr.vmem [resolvable:$true] %s2466
          %2472 = dma.vmem_to_hbm [thread:$0]  %s2467, 2048, %s2465, %s2453, 64, 64, 4
        $region36: #{tpu_custom_call.1} parent=31 // pred_fallthru
          _
      $region32: #{tpu_custom_call.1} parent=5 // pred_fallthru
        _
      %p2473 = scmp.le.s32.totalorder 2, %s12
      // Predicated region
      $region37: #{tpu_custom_call.1} parent=5 // pred_check
        %p2474 = pneg %p2473
      $region38: #{tpu_custom_call.1} parent=5 // pred_check_branch
        %2476 = sbr.rel (%p2474) target = $region40
      $region39: #{tpu_custom_call.1} parent=5 // pred_region
        %s2477 = ssub.s32 %s12, 2
        // Predicated region
        $region41: #{tpu_custom_call.1} parent=39 // pred_check
          %p2478 = pneg %p109
        $region42: #{tpu_custom_call.1} parent=39 // pred_check_branch
          %2480 = sbr.rel (%p2478) target = $region44
        $region43: #{tpu_custom_call.1} parent=39 // pred_region
          %s2481 = sand.u32 %s94, 1
          %s2482 = scalar_lea.sflag [#allocation4], %s2481
          %s2483 = sand.u32 %s94, 1
          %s2484 = smul.addr %s2483, 128
          %s2485 = scalar_lea.vmem [#allocation3], %s2484
          %2486 = dma.done %s2482, 2048
        $region44: #{tpu_custom_call.1} parent=39 // pred_fallthru
          _
      $region40: #{tpu_custom_call.1} parent=5 // pred_fallthru
        _
    $region6: #{tpu_custom_call.1} parent=1 // loop_footer
      %s16 = sadd.s32 1, %s12
    $region7: #{tpu_custom_call.1} parent=1 // loop_footer_branch
      %11 = sbr.rel target = $region3
    $region8: #{tpu_custom_call.1} parent=1 // loop_exit
      _
    %2487 = vsyncpa [#allocation4], 1
    %s2488 = scalar_lea.sflag [#allocation4], 1
    %2489 = vsyncpa %s2488, 1

</llo_original>
